<compile_context>
chip_gen: v7x
topology: tpu7x:2x2x1
jax: 0.10.0
libtpu: 0.0.40
codegen_flags: <defaults>
</compile_context>

<pallas_src>
import jax
import jax.numpy as jnp
from jax.experimental import pallas as pl
from jax.experimental.pallas import tpu as pltpu


def _round_up(x: int, m: int) -> int:
    return (x + m - 1) // m * m


# ---------------------------------------------------------------------------
# Tunables (bytes).
_TARGET_OUT_TILE_BYTES = 1 << 19   # ~512 KiB output block per grid step
_MIN_PALLAS_OUT_BYTES = 1 << 18    # below ~256 KiB of output, XLA gather is faster
_MAX_PALLAS_STATIONS = 4096        # one-hot matmul escape hatch (cost is O(N*S*F))
_VMEM_BUDGET_BYTES = 24 << 20      # per-step working-set cap, safe on v7x (64 MiB/TC)


def _vmem_working_set_bytes(tile_n: int, s_pad: int, num_features: int,
                            itemsize: int) -> int:
    """Conservative per-step VMEM footprint (double-buffered blocks + temps)."""
    table = 2 * s_pad * num_features * itemsize      # table (2 pipeline copies)
    loc = 2 * 8 * tile_n * 4                         # (1,1,tile_n) i32, sublane-padded
    out = 2 * tile_n * num_features * itemsize       # output blocks
    one_hot = 2 * s_pad * tile_n * 4                 # iota + one-hot intermediates
    result = tile_n * num_features * 4               # f32 matmul result
    return table + loc + out + one_hot + result


def _embedding_gather_kernel(loc_ref, emb_ref, out_ref):
    """One grid step: gather `tile_n` embedding rows via a one-hot matmul.

    loc_ref : (1, 1, tile_n) int32   lane-dense location ids for this tile
    emb_ref : (s_pad, F)             full padded table, VMEM-resident
    out_ref : (tile_n, F)            gathered rows
    """
    s_pad = emb_ref.shape[0]
    tile_n = out_ref.shape[0]

    loc = loc_ref[0]                                              # (1, tile_n)
    station_ids = jax.lax.broadcasted_iota(jnp.int32, (s_pad, tile_n), 0)
    one_hot_t = (station_ids == loc).astype(emb_ref.dtype)        # (s_pad, tile_n)

    # Gather = one_hot_t^T @ table.  lhs contraction on axis 0 is native on the MXU;
    # HIGHEST precision keeps the f32 lookup exact.
    out_ref[...] = jax.lax.dot_general(
        one_hot_t,
        emb_ref[...],
        dimension_numbers=(((0,), (0,)), ((), ())),
        preferred_element_type=jnp.float32,
        precision=jax.lax.Precision.HIGHEST,
    ).astype(out_ref.dtype)


def station_embedding_forward(
    embedding: jax.Array,
    location: jax.Array,
    *,
    min_pallas_out_bytes: int = _MIN_PALLAS_OUT_BYTES,
) -> jax.Array:
    """Pallas implementation of StationEmbedding.forward.

    embedding: (num_stations, num_features)
    location : integer array, any shape
    returns  : location.shape + (num_features,), dtype of `embedding`
    """
    orig_shape = location.shape
    num_stations, num_features = embedding.shape
    itemsize = jnp.dtype(embedding.dtype).itemsize

    loc_flat = location.reshape(-1).astype(jnp.int32)
    n = loc_flat.shape[0]
    if n == 0:
        return jnp.zeros(orig_shape + (num_features,), embedding.dtype)

    # PyTorch nn.Embedding raises on out-of-range ids; we clamp instead so bad ids
    # can never produce an out-of-range access (documented divergence).
    loc_flat = jnp.clip(loc_flat, 0, num_stations - 1)

    out_bytes = n * num_features * itemsize
    s_pad = _round_up(num_stations, 128)   # MXU-aligned contraction dim

    # ---- tile sizing: large, sublane-aligned output blocks -----------------------
    tile_n = max(256, _round_up(_TARGET_OUT_TILE_BYTES //
                                max(1, num_features * itemsize), 256))
    tile_n = min(tile_n, _round_up(n, 256))
    while (tile_n > 256 and
           _vmem_working_set_bytes(tile_n, s_pad, num_features, itemsize)
           > _VMEM_BUDGET_BYTES):
        tile_n = max(256, tile_n // 2)
    tile_n = max(8, (tile_n // 8) * 8)     # enforce (8,128) sublane rule

    fits_vmem = (_vmem_working_set_bytes(tile_n, s_pad, num_features, itemsize)
                 <= _VMEM_BUDGET_BYTES)

    if (out_bytes < min_pallas_out_bytes
            or num_stations > _MAX_PALLAS_STATIONS
            or not fits_vmem):
        # Small-N fast path / large-table escape hatch.
        # TODO(synk): add a PrefetchScalarGridSpec DMA-gather Pallas path for very
        # large tables instead of falling back to the XLA gather.
        return embedding[loc_flat].reshape(orig_shape + (num_features,))

    n_pad = _round_up(n, tile_n)
    n_tiles = n_pad // tile_n

    # Lane-dense id layout: one contiguous (1, 1, tile_n) row per grid step.
    # Padded rows hold id 0 and are sliced off after the call.
    loc_padded = (jnp.zeros((n_pad,), jnp.int32).at[:n].set(loc_flat)
                  .reshape(n_tiles, 1, tile_n))
    emb_padded = embedding
    if s_pad != num_stations:
        emb_padded = jnp.pad(embedding, ((0, s_pad - num_stations), (0, 0)))

    cost = pl.CostEstimate(
        flops=2 * n_pad * s_pad * num_features,
        transcendentals=0,
        bytes_accessed=(
            s_pad * num_features * itemsize      # table (loaded once, VMEM-resident)
            + n_pad * 4                          # location ids
            + n_pad * num_features * itemsize    # output
        ),
    )

    vmem_limit = int(min(
        56 << 20,
        max(32 << 20,
            _vmem_working_set_bytes(tile_n, s_pad, num_features, itemsize)
            + (16 << 20)),
    ))

    out_padded = pl.pallas_call(
        _embedding_gather_kernel,
        out_shape=jax.ShapeDtypeStruct((n_pad, num_features), embedding.dtype),
        grid=(n_tiles,),
        in_specs=[
            # Lane-dense location tile: one (1, 1, tile_n) block per grid step.
            pl.BlockSpec((1, 1, tile_n), lambda i: (i, 0, 0)),
            # Full embedding table, same block every step -> stays in VMEM.
            pl.BlockSpec((s_pad, num_features), lambda i: (0, 0)),
        ],
        out_specs=pl.BlockSpec((tile_n, num_features), lambda i: (i, 0)),
        compiler_params=pltpu.CompilerParams(
            dimension_semantics=("parallel",),   # tiles independent -> 2 TCs on v7x
            vmem_limit_bytes=vmem_limit,
        ),
        cost_estimate=cost,
    )(loc_padded, emb_padded)

    return out_padded[:n].reshape(orig_shape + (num_features,))


def make_station_embedding_params(key, num_stations: int, num_features: int) -> jax.Array:
    # Matches nn.Parameter((torch.rand(S, F) - 0.5) / 10.0) distribution.
    u = jax.random.uniform(key, (num_stations, num_features), dtype=jnp.float32)
    return (u - 0.5) / 10.0


if __name__ == "__main__":
    key = jax.random.PRNGKey(0)
    k_emb, k_loc, k_big = jax.random.split(key, 3)

    num_stations = 12
    num_features = 32
    batch, seq = 2, 8  # location shape (batch, seq)

    embedding = make_station_embedding_params(k_emb, num_stations, num_features)
    location = jax.random.randint(k_loc, (batch, seq), 0, num_stations, dtype=jnp.int32)
    ref = embedding[location, :]

    # 1) Small, module-consistent shapes, forced through the Pallas kernel path.
    out = jax.block_until_ready(
        station_embedding_forward(embedding, location, min_pallas_out_bytes=0))
    assert out.shape == (batch, seq, num_features), out.shape
    assert out.dtype == embedding.dtype
    assert jnp.allclose(out, ref), "mismatch vs reference gather (small case)"

    # 2) Same shapes through the default wrapper (takes the small-N XLA fast path).
    out_default = jax.block_until_ready(station_embedding_forward(embedding, location))
    assert jnp.allclose(out_default, ref), "mismatch vs reference gather (fast path)"

    # 3) Larger, non-tile-aligned case exercising the multi-step Pallas grid.
    big_loc = jax.random.randint(k_big, (4, 2081), 0, num_stations, dtype=jnp.int32)
    big_out = jax.block_until_ready(station_embedding_forward(embedding, big_loc))
    assert big_out.shape == (4, 2081, num_features)
    assert jnp.allclose(big_out, embedding[big_loc, :]), "mismatch on large case"

    print("KERNEL_OK")
</pallas_src>

<mosaic_0001>
module attributes {stable_mosaic.version = 11 : i64} {
  func.func @_embedding_gather_kernel(%arg0: i32, %arg1: memref<1x1x256xi32, #tpu.memory_space<vmem>>, %arg2: memref<128x32xf32, #tpu.memory_space<vmem>>, %arg3: memref<256x32xf32, #tpu.memory_space<vmem>>) attributes {dimension_semantics = [#tpu.dimension_semantics<parallel>], iteration_bounds = array<i64: 1>, scalar_prefetch = 0 : i64, scratch_operands = 0 : i64, tpu.core_type = #tpu.core_type<tc>, window_params = [{transform_indices = @transform_0, window_bounds = array<i64: 1, 1, 256>}, {pipeline_mode = #tpu.pipeline_mode<synchronous>, transform_indices = @transform_1, window_bounds = array<i64: 128, 32>}, {transform_indices = @transform_2, window_bounds = array<i64: 256, 32>}]} {
    %c0 = arith.constant 0 : index
    %c0_0 = arith.constant 0 : index
    %c0_1 = arith.constant 0 : index
    %0 = vector.load %arg1[%c0, %c0_0, %c0_1] : memref<1x1x256xi32, #tpu.memory_space<vmem>>, vector<1x1x256xi32>
    %1 = vector.shape_cast %0 : vector<1x1x256xi32> to vector<1x256xi32>
    %2 = tpu.iota {dimensions = array<i32: 0>} : vector<128x256xi32>
    %3 = vector.broadcast %1 : vector<1x256xi32> to vector<128x256xi32>
    %4 = arith.cmpi eq, %2, %3 : vector<128x256xi32>
    %5 = arith.extui %4 : vector<128x256xi1> to vector<128x256xi32>
    %6 = arith.sitofp %5 : vector<128x256xi32> to vector<128x256xf32>
    %c0_2 = arith.constant 0 : index
    %c0_3 = arith.constant 0 : index
    %7 = vector.load %arg2[%c0_2, %c0_3] : memref<128x32xf32, #tpu.memory_space<vmem>>, vector<128x32xf32>
    %cst = arith.constant dense<0.000000e+00> : vector<256x32xf32>
    %8 = tpu.matmul %6, %7, %cst {dimension_numbers = #tpu.dot_dimension_numbers<[0], [0], [1], [1], [0, 1, 1, 1], [], []>, precision = #tpu.contract_precision<fp32>} : vector<128x256xf32>, vector<128x32xf32>, vector<256x32xf32> -> vector<256x32xf32>
    %c0_4 = arith.constant 0 : index
    %c0_5 = arith.constant 0 : index
    %9 = vector.load %arg3[%c0_4, %c0_5] : memref<256x32xf32, #tpu.memory_space<vmem>>, vector<256x32xf32>
    tpu.vector_store %arg3[%c0_4, %c0_5], %8 {strides = array<i32>} : memref<256x32xf32, #tpu.memory_space<vmem>>, vector<256x32xf32>,
    return
  }
  func.func @transform_0(%arg0: i32) -> (i32, i32, i32) {
    %c0_i32 = arith.constant 0 : i32
    %c0_i32_0 = arith.constant 0 : i32
    %c0_i32_1 = arith.constant 0 : i32
    return %arg0, %c0_i32, %c0_i32_0 : i32, i32, i32
  }
  func.func @transform_1(%arg0: i32) -> (i32, i32) {
    %c0_i32 = arith.constant 0 : i32
    %c0_i32_0 = arith.constant 0 : i32
    %c0_i32_1 = arith.constant 0 : i32
    return %c0_i32, %c0_i32_0 : i32, i32
  }
  func.func @transform_2(%arg0: i32) -> (i32, i32) {
    %c0_i32 = arith.constant 0 : i32
    %c0_i32_0 = arith.constant 0 : i32
    return %arg0, %c0_i32 : i32, i32
  }
}

</mosaic_0001>

<llo_original>
// kernel: tpu_custom_call.1
$region0: #{tpu_custom_call.1}
  #allocation0 [shape = 'u32[]', space=smem, size = 0x4, offset = 0x4, fixed_abs, tag = 'smem constant byte address 0x4 - core index']
  #allocation1 [shape = 'u32[144,128]{1,0:T(1,128)}', space=vmem, size = 0x12000, scoped, tag = 'internal scratch']
  %s0 = inlined_call_operand.vmem [shape: s32[1,1,256], index: 0, kind: input, shape index: {}]
  %s1 = inlined_call_operand.vmem [shape: f32[128,32], index: 1, kind: input, shape index: {}]
  %s2 = inlined_call_operand.vmem [shape: f32[256,32], index: 2, kind: output, shape index: {}]
  %s3 = sld [smem:[#allocation0]]
  $region18: #{tpu_custom_call.1} parent=0
    _
  %s5 = ssub.s32 1, %s3
  %s6 = scalar_select 0, %s5, %s3
  // Predicated region
  $region2: #{tpu_custom_call.1} parent=0 // pred_check
    _
  $region3: #{tpu_custom_call.1} parent=0 // pred_check_branch
    %8 = sbr.rel (0) target = $region5
  $region4: #{tpu_custom_call.1} parent=0 // pred_region
    _
  $region5: #{tpu_custom_call.1} parent=0 // pred_fallthru
    _
  // Predicated region
  $region6: #{tpu_custom_call.1} parent=0 // pred_check
    _
  $region7: #{tpu_custom_call.1} parent=0 // pred_check_branch
    %10 = sbr.rel (0) target = $region9
  $region8: #{tpu_custom_call.1} parent=0 // pred_region
    _
  $region9: #{tpu_custom_call.1} parent=0 // pred_fallthru
    _
  %v11 = vld [vmem:[%s0] sm:$0x3]
  %v12 = vlaneseq
  %v13 = vshrl.u32 %v12, 7
  %v14 = vadd.s32 %v13, 8
  %v15 = vadd.s32 %v13, 16
  %v16 = vadd.s32 %v13, 24
  %v17 = vadd.s32 %v13, 32
  %v18 = vadd.s32 %v13, 40
  %v19 = vadd.s32 %v13, 48
  %v20 = vadd.s32 %v13, 56
  %v21 = vadd.s32 %v13, 64
  %v22 = vadd.s32 %v13, 72
  %v23 = vadd.s32 %v13, 80
  %v24 = vadd.s32 %v13, 88
  %v25 = vadd.s32 %v13, 96
  %v26 = vadd.s32 %v13, 104
  %v27 = vadd.s32 %v13, 112
  %v28 = vadd.s32 %v13, 120
  %v29 = vlaneseq
  %v30 = vshrl.u32 %v29, 7
  %v31 = vsub.s32 0, %v30
  %v32 = vrot.slane %v11, %v31
  %v33 = vlaneseq
  %v34 = vshrl.u32 %v33, 7
  %v35 = vsub.s32 1, %v34
  %v36 = vrot.slane %v11, %v35
  %vm37 = vcmp.eq.s32.totalorder %v13, %v32
  %vm38 = vcmp.eq.s32.totalorder %v13, %v36
  %vm39 = vcmp.eq.s32.totalorder %v14, %v32
  %vm40 = vcmp.eq.s32.totalorder %v14, %v36
  %vm41 = vcmp.eq.s32.totalorder %v15, %v32
  %vm42 = vcmp.eq.s32.totalorder %v15, %v36
  %vm43 = vcmp.eq.s32.totalorder %v16, %v32
  %vm44 = vcmp.eq.s32.totalorder %v16, %v36
  %vm45 = vcmp.eq.s32.totalorder %v17, %v32
  %vm46 = vcmp.eq.s32.totalorder %v17, %v36
  %vm47 = vcmp.eq.s32.totalorder %v18, %v32
  %vm48 = vcmp.eq.s32.totalorder %v18, %v36
  %vm49 = vcmp.eq.s32.totalorder %v19, %v32
  %vm50 = vcmp.eq.s32.totalorder %v19, %v36
  %vm51 = vcmp.eq.s32.totalorder %v20, %v32
  %vm52 = vcmp.eq.s32.totalorder %v20, %v36
  %vm53 = vcmp.eq.s32.totalorder %v21, %v32
  %vm54 = vcmp.eq.s32.totalorder %v21, %v36
  %vm55 = vcmp.eq.s32.totalorder %v22, %v32
  %vm56 = vcmp.eq.s32.totalorder %v22, %v36
  %vm57 = vcmp.eq.s32.totalorder %v23, %v32
  %vm58 = vcmp.eq.s32.totalorder %v23, %v36
  %vm59 = vcmp.eq.s32.totalorder %v24, %v32
  %vm60 = vcmp.eq.s32.totalorder %v24, %v36
  %vm61 = vcmp.eq.s32.totalorder %v25, %v32
  %vm62 = vcmp.eq.s32.totalorder %v25, %v36
  %vm63 = vcmp.eq.s32.totalorder %v26, %v32
  %vm64 = vcmp.eq.s32.totalorder %v26, %v36
  %vm65 = vcmp.eq.s32.totalorder %v27, %v32
  %vm66 = vcmp.eq.s32.totalorder %v27, %v36
  %vm67 = vcmp.eq.s32.totalorder %v28, %v32
  %vm68 = vcmp.eq.s32.totalorder %v28, %v36
  %v69 = vsel %vm37, 1, 0
  %v70 = vsel %vm38, 1, 0
  %v71 = vsel %vm39, 1, 0
  %v72 = vsel %vm40, 1, 0
  %v73 = vsel %vm41, 1, 0
  %v74 = vsel %vm42, 1, 0
  %v75 = vsel %vm43, 1, 0
  %v76 = vsel %vm44, 1, 0
  %v77 = vsel %vm45, 1, 0
  %v78 = vsel %vm46, 1, 0
  %v79 = vsel %vm47, 1, 0
  %v80 = vsel %vm48, 1, 0
  %v81 = vsel %vm49, 1, 0
  %v82 = vsel %vm50, 1, 0
  %v83 = vsel %vm51, 1, 0
  %v84 = vsel %vm52, 1, 0
  %v85 = vsel %vm53, 1, 0
  %v86 = vsel %vm54, 1, 0
  %v87 = vsel %vm55, 1, 0
  %v88 = vsel %vm56, 1, 0
  %v89 = vsel %vm57, 1, 0
  %v90 = vsel %vm58, 1, 0
  %v91 = vsel %vm59, 1, 0
  %v92 = vsel %vm60, 1, 0
  %v93 = vsel %vm61, 1, 0
  %v94 = vsel %vm62, 1, 0
  %v95 = vsel %vm63, 1, 0
  %v96 = vsel %vm64, 1, 0
  %v97 = vsel %vm65, 1, 0
  %v98 = vsel %vm66, 1, 0
  %v99 = vsel %vm67, 1, 0
  %v100 = vsel %vm68, 1, 0
  %v101 = vcvt.s32.f32 %v69
  %v102 = vcvt.s32.f32 %v70
  %v103 = vcvt.s32.f32 %v71
  %v104 = vcvt.s32.f32 %v72
  %v105 = vcvt.s32.f32 %v73
  %v106 = vcvt.s32.f32 %v74
  %v107 = vcvt.s32.f32 %v75
  %v108 = vcvt.s32.f32 %v76
  %v109 = vcvt.s32.f32 %v77
  %v110 = vcvt.s32.f32 %v78
  %v111 = vcvt.s32.f32 %v79
  %v112 = vcvt.s32.f32 %v80
  %v113 = vcvt.s32.f32 %v81
  %v114 = vcvt.s32.f32 %v82
  %v115 = vcvt.s32.f32 %v83
  %v116 = vcvt.s32.f32 %v84
  %v117 = vcvt.s32.f32 %v85
  %v118 = vcvt.s32.f32 %v86
  %v119 = vcvt.s32.f32 %v87
  %v120 = vcvt.s32.f32 %v88
  %v121 = vcvt.s32.f32 %v89
  %v122 = vcvt.s32.f32 %v90
  %v123 = vcvt.s32.f32 %v91
  %v124 = vcvt.s32.f32 %v92
  %v125 = vcvt.s32.f32 %v93
  %v126 = vcvt.s32.f32 %v94
  %v127 = vcvt.s32.f32 %v95
  %v128 = vcvt.s32.f32 %v96
  %v129 = vcvt.s32.f32 %v97
  %v130 = vcvt.s32.f32 %v98
  %v131 = vcvt.s32.f32 %v99
  %v132 = vcvt.s32.f32 %v100
  %v133 = vld [vmem:[%s1] sm:$0xff]
  %v134 = vld [vmem:[%s1 + $0x8] sm:$0xff]
  %v135 = vld [vmem:[%s1 + $0x10] sm:$0xff]
  %v136 = vld [vmem:[%s1 + $0x18] sm:$0xff]
  %v137 = vld [vmem:[%s1 + $0x20] sm:$0xff]
  %v138 = vld [vmem:[%s1 + $0x28] sm:$0xff]
  %v139 = vld [vmem:[%s1 + $0x30] sm:$0xff]
  %v140 = vld [vmem:[%s1 + $0x38] sm:$0xff]
  %v141 = vld [vmem:[%s1 + $0x40] sm:$0xff]
  %v142 = vld [vmem:[%s1 + $0x48] sm:$0xff]
  %v143 = vld [vmem:[%s1 + $0x50] sm:$0xff]
  %v144 = vld [vmem:[%s1 + $0x58] sm:$0xff]
  %v145 = vld [vmem:[%s1 + $0x60] sm:$0xff]
  %v146 = vld [vmem:[%s1 + $0x68] sm:$0xff]
  %v147 = vld [vmem:[%s1 + $0x70] sm:$0xff]
  %v148 = vld [vmem:[%s1 + $0x78] sm:$0xff]
  %149 = vxpose.xlu0.b32.start [1/16] %v101, 128
  %150 = vxpose.xlu0.b32.cont [2/16] %v103, 128
  %151 = vxpose.xlu0.b32.cont [3/16] %v105, 128
  %152 = vxpose.xlu0.b32.cont [4/16] %v107, 128
  %153 = vxpose.xlu0.b32.cont [5/16] %v109, 128
  %154 = vxpose.xlu0.b32.cont [6/16] %v111, 128
  %155 = vxpose.xlu0.b32.cont [7/16] %v113, 128
  %156 = vxpose.xlu0.b32.cont [8/16] %v115, 128
  %157 = vxpose.xlu0.b32.cont [9/16] %v117, 128
  %158 = vxpose.xlu0.b32.cont [10/16] %v119, 128
  %159 = vxpose.xlu0.b32.cont [11/16] %v121, 128
  %160 = vxpose.xlu0.b32.cont [12/16] %v123, 128
  %161 = vxpose.xlu0.b32.cont [13/16] %v125, 128
  %162 = vxpose.xlu0.b32.cont [14/16] %v127, 128
  %163 = vxpose.xlu0.b32.cont [15/16] %v129, 128
  %164 = vxpose.xlu0.b32.end [16/16] %v131, 128
  %v165 = vpop.trf.xlu0
  %v166 = vpop.trf.xlu0
  %v167 = vpop.trf.xlu0
  %v168 = vpop.trf.xlu0
  %v169 = vpop.trf.xlu0
  %v170 = vpop.trf.xlu0
  %v171 = vpop.trf.xlu0
  %v172 = vpop.trf.xlu0
  %v173 = vpop.trf.xlu0
  %v174 = vpop.trf.xlu0
  %v175 = vpop.trf.xlu0
  %v176 = vpop.trf.xlu0
  %v177 = vpop.trf.xlu0
  %v178 = vpop.trf.xlu0
  %v179 = vpop.trf.xlu0
  %v180 = vpop.trf.xlu0
  %181 = vxpose.xlu0.b32.start [1/16] %v102, 128
  %182 = vxpose.xlu0.b32.cont [2/16] %v104, 128
  %183 = vxpose.xlu0.b32.cont [3/16] %v106, 128
  %184 = vxpose.xlu0.b32.cont [4/16] %v108, 128
  %185 = vxpose.xlu0.b32.cont [5/16] %v110, 128
  %186 = vxpose.xlu0.b32.cont [6/16] %v112, 128
  %187 = vxpose.xlu0.b32.cont [7/16] %v114, 128
  %188 = vxpose.xlu0.b32.cont [8/16] %v116, 128
  %189 = vxpose.xlu0.b32.cont [9/16] %v118, 128
  %190 = vxpose.xlu0.b32.cont [10/16] %v120, 128
  %191 = vxpose.xlu0.b32.cont [11/16] %v122, 128
  %192 = vxpose.xlu0.b32.cont [12/16] %v124, 128
  %193 = vxpose.xlu0.b32.cont [13/16] %v126, 128
  %194 = vxpose.xlu0.b32.cont [14/16] %v128, 128
  %195 = vxpose.xlu0.b32.cont [15/16] %v130, 128
  %196 = vxpose.xlu0.b32.end [16/16] %v132, 128
  %v197 = vpop.trf.xlu0
  %v198 = vpop.trf.xlu0
  %v199 = vpop.trf.xlu0
  %v200 = vpop.trf.xlu0
  %v201 = vpop.trf.xlu0
  %v202 = vpop.trf.xlu0
  %v203 = vpop.trf.xlu0
  %v204 = vpop.trf.xlu0
  %v205 = vpop.trf.xlu0
  %v206 = vpop.trf.xlu0
  %v207 = vpop.trf.xlu0
  %v208 = vpop.trf.xlu0
  %v209 = vpop.trf.xlu0
  %v210 = vpop.trf.xlu0
  %v211 = vpop.trf.xlu0
  %v212 = vpop.trf.xlu0
  %213 = vmatprep.subr.mxu0 0.0
  %v214 = vand.u32 %v133, 4294901760
  %215 = vmatpush1.msra.mxu0 %v214
  %216 = vmatprep.subr.mxu0 0.0
  %v217 = vand.u32 %v134, 4294901760
  %218 = vmatpush1.msra.mxu0 %v217
  %219 = vmatprep.subr.mxu0 0.0
  %v220 = vand.u32 %v135, 4294901760
  %221 = vmatpush1.msra.mxu0 %v220
  %222 = vmatprep.subr.mxu0 0.0
  %v223 = vand.u32 %v136, 4294901760
  %224 = vmatpush1.msra.mxu0 %v223
  %225 = vmatprep.subr.mxu0 0.0
  %v226 = vand.u32 %v137, 4294901760
  %227 = vmatpush1.msra.mxu0 %v226
  %228 = vmatprep.subr.mxu0 0.0
  %v229 = vand.u32 %v138, 4294901760
  %230 = vmatpush1.msra.mxu0 %v229
  %231 = vmatprep.subr.mxu0 0.0
  %v232 = vand.u32 %v139, 4294901760
  %233 = vmatpush1.msra.mxu0 %v232
  %234 = vmatprep.subr.mxu0 0.0
  %v235 = vand.u32 %v140, 4294901760
  %236 = vmatpush1.msra.mxu0 %v235
  %237 = vmatprep.subr.mxu0 0.0
  %v238 = vand.u32 %v141, 4294901760
  %239 = vmatpush1.msra.mxu0 %v238
  %240 = vmatprep.subr.mxu0 0.0
  %v241 = vand.u32 %v142, 4294901760
  %242 = vmatpush1.msra.mxu0 %v241
  %243 = vmatprep.subr.mxu0 0.0
  %v244 = vand.u32 %v143, 4294901760
  %245 = vmatpush1.msra.mxu0 %v244
  %246 = vmatprep.subr.mxu0 0.0
  %v247 = vand.u32 %v144, 4294901760
  %248 = vmatpush1.msra.mxu0 %v247
  %249 = vmatprep.subr.mxu0 0.0
  %v250 = vand.u32 %v145, 4294901760
  %251 = vmatpush1.msra.mxu0 %v250
  %252 = vmatprep.subr.mxu0 0.0
  %v253 = vand.u32 %v146, 4294901760
  %254 = vmatpush1.msra.mxu0 %v253
  %255 = vmatprep.subr.mxu0 0.0
  %v256 = vand.u32 %v147, 4294901760
  %257 = vmatpush1.msra.mxu0 %v256
  %258 = vmatprep.subr.mxu0 0.0
  %v259 = vand.u32 %v148, 4294901760
  %260 = vmatpush1.msra.mxu0 %v259
  %261 = vmatprep.subr.mxu0 0.0
  %262 = vmatpush1.msra.mxu0 0.0
  %263 = vmatprep.subr.mxu0 0.0
  %264 = vmatpush1.msra.mxu0 0.0
  %265 = vmatprep.subr.mxu0 0.0
  %266 = vmatpush1.msra.mxu0 0.0
  %267 = vmatprep.subr.mxu0 0.0
  %268 = vmatpush1.msra.mxu0 0.0
  %269 = vmatprep.subr.mxu0 0.0
  %270 = vmatpush1.msra.mxu0 0.0
  %271 = vmatprep.subr.mxu0 0.0
  %272 = vmatpush1.msra.mxu0 0.0
  %273 = vmatprep.subr.mxu0 0.0
  %274 = vmatpush1.msra.mxu0 0.0
  %275 = vmatprep.subr.mxu0 0.0
  %276 = vmatpush1.msra.mxu0 0.0
  %277 = vmatprep.subr.mxu0 0.0
  %278 = vmatpush1.msra.mxu0 0.0
  %279 = vmatprep.subr.mxu0 0.0
  %280 = vmatpush1.msra.mxu0 0.0
  %281 = vmatprep.subr.mxu0 0.0
  %282 = vmatpush1.msra.mxu0 0.0
  %283 = vmatprep.subr.mxu0 0.0
  %284 = vmatpush1.msra.mxu0 0.0
  %285 = vmatprep.subr.mxu0 0.0
  %286 = vmatpush1.msra.mxu0 0.0
  %287 = vmatprep.subr.mxu0 0.0
  %288 = vmatpush1.msra.mxu0 0.0
  %289 = vmatprep.subr.mxu0 0.0
  %290 = vmatpush1.msra.mxu0 0.0
  %291 = vmatprep.subr.mxu0 0.0
  %292 = vmatpush1.msra.mxu0 0.0
  %293 = vmatprep.mubr.f32.mxu0 0.0
  %v294 = vand.u32 %v165, 4294901760
  %v295 = vsub.f32 %v165, %v294
  %v296 = vand.u32 %v295, 4294901760
  %v297 = vsub.f32 %v295, %v296
  %v298 = vand.u32 %v297, 4294901760
  %299 = vmatmul.mubr.f32.gmra.mrb[0].mxu0 %v298
  %v300 = vpop.f32.mrb[0].mxu0
  %v301 = vadd.f32 0.0, %v300
  %v302 = vpop.f32.mrb[0].mxu0
  %303 = vmatprep.mubr.f32.mxu0 0.0
  %v304 = vand.u32 %v166, 4294901760
  %v305 = vsub.f32 %v166, %v304
  %v306 = vand.u32 %v305, 4294901760
  %v307 = vsub.f32 %v305, %v306
  %v308 = vand.u32 %v307, 4294901760
  %309 = vmatmul.mubr.f32.gmra.mrb[0].mxu0 %v308
  %v310 = vpop.f32.mrb[0].mxu0
  %v311 = vadd.f32 0.0, %v310
  %v312 = vpop.f32.mrb[0].mxu0
  %313 = vmatprep.mubr.f32.mxu0 0.0
  %v314 = vand.u32 %v167, 4294901760
  %v315 = vsub.f32 %v167, %v314
  %v316 = vand.u32 %v315, 4294901760
  %v317 = vsub.f32 %v315, %v316
  %v318 = vand.u32 %v317, 4294901760
  %319 = vmatmul.mubr.f32.gmra.mrb[0].mxu0 %v318
  %v320 = vpop.f32.mrb[0].mxu0
  %v321 = vadd.f32 0.0, %v320
  %v322 = vpop.f32.mrb[0].mxu0
  %323 = vmatprep.mubr.f32.mxu0 0.0
  %v324 = vand.u32 %v168, 4294901760
  %v325 = vsub.f32 %v168, %v324
  %v326 = vand.u32 %v325, 4294901760
  %v327 = vsub.f32 %v325, %v326
  %v328 = vand.u32 %v327, 4294901760
  %329 = vmatmul.mubr.f32.gmra.mrb[0].mxu0 %v328
  %v330 = vpop.f32.mrb[0].mxu0
  %v331 = vadd.f32 0.0, %v330
  %v332 = vpop.f32.mrb[0].mxu0
  %333 = vmatprep.mubr.f32.mxu0 0.0
  %v334 = vand.u32 %v169, 4294901760
  %v335 = vsub.f32 %v169, %v334
  %v336 = vand.u32 %v335, 4294901760
  %v337 = vsub.f32 %v335, %v336
  %v338 = vand.u32 %v337, 4294901760
  %339 = vmatmul.mubr.f32.gmra.mrb[0].mxu0 %v338
  %v340 = vpop.f32.mrb[0].mxu0
  %v341 = vadd.f32 0.0, %v340
  %v342 = vpop.f32.mrb[0].mxu0
  %343 = vmatprep.mubr.f32.mxu0 0.0
  %v344 = vand.u32 %v170, 4294901760
  %v345 = vsub.f32 %v170, %v344
  %v346 = vand.u32 %v345, 4294901760
  %v347 = vsub.f32 %v345, %v346
  %v348 = vand.u32 %v347, 4294901760
  %349 = vmatmul.mubr.f32.gmra.mrb[0].mxu0 %v348
  %v350 = vpop.f32.mrb[0].mxu0
  %v351 = vadd.f32 0.0, %v350
  %v352 = vpop.f32.mrb[0].mxu0
  %353 = vmatprep.mubr.f32.mxu0 0.0
  %v354 = vand.u32 %v171, 4294901760
  %v355 = vsub.f32 %v171, %v354
  %v356 = vand.u32 %v355, 4294901760
  %v357 = vsub.f32 %v355, %v356
  %v358 = vand.u32 %v357, 4294901760
  %359 = vmatmul.mubr.f32.gmra.mrb[0].mxu0 %v358
  %v360 = vpop.f32.mrb[0].mxu0
  %v361 = vadd.f32 0.0, %v360
  %v362 = vpop.f32.mrb[0].mxu0
  %363 = vmatprep.mubr.f32.mxu0 0.0
  %v364 = vand.u32 %v172, 4294901760
  %v365 = vsub.f32 %v172, %v364
  %v366 = vand.u32 %v365, 4294901760
  %v367 = vsub.f32 %v365, %v366
  %v368 = vand.u32 %v367, 4294901760
  %369 = vmatmul.mubr.f32.gmra.mrb[0].mxu0 %v368
  %v370 = vpop.f32.mrb[0].mxu0
  %v371 = vadd.f32 0.0, %v370
  %v372 = vpop.f32.mrb[0].mxu0
  %373 = vmatprep.mubr.f32.mxu0 0.0
  %v374 = vand.u32 %v173, 4294901760
  %v375 = vsub.f32 %v173, %v374
  %v376 = vand.u32 %v375, 4294901760
  %v377 = vsub.f32 %v375, %v376
  %v378 = vand.u32 %v377, 4294901760
  %379 = vmatmul.mubr.f32.gmra.mrb[0].mxu0 %v378
  %v380 = vpop.f32.mrb[0].mxu0
  %v381 = vadd.f32 0.0, %v380
  %v382 = vpop.f32.mrb[0].mxu0
  %383 = vmatprep.mubr.f32.mxu0 0.0
  %v384 = vand.u32 %v174, 4294901760
  %v385 = vsub.f32 %v174, %v384
  %v386 = vand.u32 %v385, 4294901760
  %v387 = vsub.f32 %v385, %v386
  %v388 = vand.u32 %v387, 4294901760
  %389 = vmatmul.mubr.f32.gmra.mrb[0].mxu0 %v388
  %v390 = vpop.f32.mrb[0].mxu0
  %v391 = vadd.f32 0.0, %v390
  %v392 = vpop.f32.mrb[0].mxu0
  %393 = vmatprep.mubr.f32.mxu0 0.0
  %v394 = vand.u32 %v175, 4294901760
  %v395 = vsub.f32 %v175, %v394
  %v396 = vand.u32 %v395, 4294901760
  %v397 = vsub.f32 %v395, %v396
  %v398 = vand.u32 %v397, 4294901760
  %399 = vmatmul.mubr.f32.gmra.mrb[0].mxu0 %v398
  %v400 = vpop.f32.mrb[0].mxu0
  %v401 = vadd.f32 0.0, %v400
  %v402 = vpop.f32.mrb[0].mxu0
  %403 = vmatprep.mubr.f32.mxu0 0.0
  %v404 = vand.u32 %v176, 4294901760
  %v405 = vsub.f32 %v176, %v404
  %v406 = vand.u32 %v405, 4294901760
  %v407 = vsub.f32 %v405, %v406
  %v408 = vand.u32 %v407, 4294901760
  %409 = vmatmul.mubr.f32.gmra.mrb[0].mxu0 %v408
  %v410 = vpop.f32.mrb[0].mxu0
  %v411 = vadd.f32 0.0, %v410
  %v412 = vpop.f32.mrb[0].mxu0
  %413 = vmatprep.mubr.f32.mxu0 0.0
  %v414 = vand.u32 %v177, 4294901760
  %v415 = vsub.f32 %v177, %v414
  %v416 = vand.u32 %v415, 4294901760
  %v417 = vsub.f32 %v415, %v416
  %v418 = vand.u32 %v417, 4294901760
  %419 = vmatmul.mubr.f32.gmra.mrb[0].mxu0 %v418
  %v420 = vpop.f32.mrb[0].mxu0
  %v421 = vadd.f32 0.0, %v420
  %v422 = vpop.f32.mrb[0].mxu0
  %423 = vmatprep.mubr.f32.mxu0 0.0
  %v424 = vand.u32 %v178, 4294901760
  %v425 = vsub.f32 %v178, %v424
  %v426 = vand.u32 %v425, 4294901760
  %v427 = vsub.f32 %v425, %v426
  %v428 = vand.u32 %v427, 4294901760
  %429 = vmatmul.mubr.f32.gmra.mrb[0].mxu0 %v428
  %v430 = vpop.f32.mrb[0].mxu0
  %v431 = vadd.f32 0.0, %v430
  %v432 = vpop.f32.mrb[0].mxu0
  %433 = vmatprep.mubr.f32.mxu0 0.0
  %v434 = vand.u32 %v179, 4294901760
  %v435 = vsub.f32 %v179, %v434
  %v436 = vand.u32 %v435, 4294901760
  %v437 = vsub.f32 %v435, %v436
  %v438 = vand.u32 %v437, 4294901760
  %439 = vmatmul.mubr.f32.gmra.mrb[0].mxu0 %v438
  %v440 = vpop.f32.mrb[0].mxu0
  %v441 = vadd.f32 0.0, %v440
  %v442 = vpop.f32.mrb[0].mxu0
  %443 = vmatprep.mubr.f32.mxu0 0.0
  %v444 = vand.u32 %v180, 4294901760
  %v445 = vsub.f32 %v180, %v444
  %v446 = vand.u32 %v445, 4294901760
  %v447 = vsub.f32 %v445, %v446
  %v448 = vand.u32 %v447, 4294901760
  %449 = vmatmul.mubr.f32.gmra.mrb[0].mxu0 %v448
  %v450 = vpop.f32.mrb[0].mxu0
  %v451 = vadd.f32 0.0, %v450
  %v452 = vpop.f32.mrb[0].mxu0
  %453 = vmatprep.mubr.f32.mxu0 0.0
  %v454 = vand.u32 %v197, 4294901760
  %v455 = vsub.f32 %v197, %v454
  %v456 = vand.u32 %v455, 4294901760
  %v457 = vsub.f32 %v455, %v456
  %v458 = vand.u32 %v457, 4294901760
  %459 = vmatmul.mubr.f32.gmra.mrb[0].mxu0 %v458
  %v460 = vpop.f32.mrb[0].mxu0
  %v461 = vadd.f32 0.0, %v460
  %v462 = vpop.f32.mrb[0].mxu0
  %463 = vmatprep.mubr.f32.mxu0 0.0
  %v464 = vand.u32 %v198, 4294901760
  %v465 = vsub.f32 %v198, %v464
  %v466 = vand.u32 %v465, 4294901760
  %v467 = vsub.f32 %v465, %v466
  %v468 = vand.u32 %v467, 4294901760
  %469 = vmatmul.mubr.f32.gmra.mrb[0].mxu0 %v468
  %v470 = vpop.f32.mrb[0].mxu0
  %v471 = vadd.f32 0.0, %v470
  %v472 = vpop.f32.mrb[0].mxu0
  %473 = vmatprep.mubr.f32.mxu0 0.0
  %v474 = vand.u32 %v199, 4294901760
  %v475 = vsub.f32 %v199, %v474
  %v476 = vand.u32 %v475, 4294901760
  %v477 = vsub.f32 %v475, %v476
  %v478 = vand.u32 %v477, 4294901760
  %479 = vmatmul.mubr.f32.gmra.mrb[0].mxu0 %v478
  %v480 = vpop.f32.mrb[0].mxu0
  %v481 = vadd.f32 0.0, %v480
  %v482 = vpop.f32.mrb[0].mxu0
  %483 = vmatprep.mubr.f32.mxu0 0.0
  %v484 = vand.u32 %v200, 4294901760
  %v485 = vsub.f32 %v200, %v484
  %v486 = vand.u32 %v485, 4294901760
  %v487 = vsub.f32 %v485, %v486
  %v488 = vand.u32 %v487, 4294901760
  %489 = vmatmul.mubr.f32.gmra.mrb[0].mxu0 %v488
  %v490 = vpop.f32.mrb[0].mxu0
  %v491 = vadd.f32 0.0, %v490
  %v492 = vpop.f32.mrb[0].mxu0
  %493 = vmatprep.mubr.f32.mxu0 0.0
  %v494 = vand.u32 %v201, 4294901760
  %v495 = vsub.f32 %v201, %v494
  %v496 = vand.u32 %v495, 4294901760
  %v497 = vsub.f32 %v495, %v496
  %v498 = vand.u32 %v497, 4294901760
  %499 = vmatmul.mubr.f32.gmra.mrb[0].mxu0 %v498
  %v500 = vpop.f32.mrb[0].mxu0
  %v501 = vadd.f32 0.0, %v500
  %v502 = vpop.f32.mrb[0].mxu0
  %503 = vmatprep.mubr.f32.mxu0 0.0
  %v504 = vand.u32 %v202, 4294901760
  %v505 = vsub.f32 %v202, %v504
  %v506 = vand.u32 %v505, 4294901760
  %v507 = vsub.f32 %v505, %v506
  %v508 = vand.u32 %v507, 4294901760
  %509 = vmatmul.mubr.f32.gmra.mrb[0].mxu0 %v508
  %v510 = vpop.f32.mrb[0].mxu0
  %v511 = vadd.f32 0.0, %v510
  %v512 = vpop.f32.mrb[0].mxu0
  %513 = vmatprep.mubr.f32.mxu0 0.0
  %v514 = vand.u32 %v203, 4294901760
  %v515 = vsub.f32 %v203, %v514
  %v516 = vand.u32 %v515, 4294901760
  %v517 = vsub.f32 %v515, %v516
  %v518 = vand.u32 %v517, 4294901760
  %519 = vmatmul.mubr.f32.gmra.mrb[0].mxu0 %v518
  %v520 = vpop.f32.mrb[0].mxu0
  %v521 = vadd.f32 0.0, %v520
  %v522 = vpop.f32.mrb[0].mxu0
  %523 = vmatprep.mubr.f32.mxu0 0.0
  %v524 = vand.u32 %v204, 4294901760
  %v525 = vsub.f32 %v204, %v524
  %v526 = vand.u32 %v525, 4294901760
  %v527 = vsub.f32 %v525, %v526
  %v528 = vand.u32 %v527, 4294901760
  %529 = vmatmul.mubr.f32.gmra.mrb[0].mxu0 %v528
  %v530 = vpop.f32.mrb[0].mxu0
  %v531 = vadd.f32 0.0, %v530
  %v532 = vpop.f32.mrb[0].mxu0
  %533 = vmatprep.mubr.f32.mxu0 0.0
  %v534 = vand.u32 %v205, 4294901760
  %v535 = vsub.f32 %v205, %v534
  %v536 = vand.u32 %v535, 4294901760
  %v537 = vsub.f32 %v535, %v536
  %v538 = vand.u32 %v537, 4294901760
  %539 = vmatmul.mubr.f32.gmra.mrb[0].mxu0 %v538
  %v540 = vpop.f32.mrb[0].mxu0
  %v541 = vadd.f32 0.0, %v540
  %v542 = vpop.f32.mrb[0].mxu0
  %543 = vmatprep.mubr.f32.mxu0 0.0
  %v544 = vand.u32 %v206, 4294901760
  %v545 = vsub.f32 %v206, %v544
  %v546 = vand.u32 %v545, 4294901760
  %v547 = vsub.f32 %v545, %v546
  %v548 = vand.u32 %v547, 4294901760
  %549 = vmatmul.mubr.f32.gmra.mrb[0].mxu0 %v548
  %v550 = vpop.f32.mrb[0].mxu0
  %v551 = vadd.f32 0.0, %v550
  %v552 = vpop.f32.mrb[0].mxu0
  %553 = vmatprep.mubr.f32.mxu0 0.0
  %v554 = vand.u32 %v207, 4294901760
  %v555 = vsub.f32 %v207, %v554
  %v556 = vand.u32 %v555, 4294901760
  %v557 = vsub.f32 %v555, %v556
  %v558 = vand.u32 %v557, 4294901760
  %559 = vmatmul.mubr.f32.gmra.mrb[0].mxu0 %v558
  %v560 = vpop.f32.mrb[0].mxu0
  %v561 = vadd.f32 0.0, %v560
  %v562 = vpop.f32.mrb[0].mxu0
  %563 = vmatprep.mubr.f32.mxu0 0.0
  %v564 = vand.u32 %v208, 4294901760
  %v565 = vsub.f32 %v208, %v564
  %v566 = vand.u32 %v565, 4294901760
  %v567 = vsub.f32 %v565, %v566
  %v568 = vand.u32 %v567, 4294901760
  %569 = vmatmul.mubr.f32.gmra.mrb[0].mxu0 %v568
  %v570 = vpop.f32.mrb[0].mxu0
  %v571 = vadd.f32 0.0, %v570
  %v572 = vpop.f32.mrb[0].mxu0
  %573 = vmatprep.mubr.f32.mxu0 0.0
  %v574 = vand.u32 %v209, 4294901760
  %v575 = vsub.f32 %v209, %v574
  %v576 = vand.u32 %v575, 4294901760
  %v577 = vsub.f32 %v575, %v576
  %v578 = vand.u32 %v577, 4294901760
  %579 = vmatmul.mubr.f32.gmra.mrb[0].mxu0 %v578
  %v580 = vpop.f32.mrb[0].mxu0
  %v581 = vadd.f32 0.0, %v580
  %v582 = vpop.f32.mrb[0].mxu0
  %583 = vmatprep.mubr.f32.mxu0 0.0
  %v584 = vand.u32 %v210, 4294901760
  %v585 = vsub.f32 %v210, %v584
  %v586 = vand.u32 %v585, 4294901760
  %v587 = vsub.f32 %v585, %v586
  %v588 = vand.u32 %v587, 4294901760
  %589 = vmatmul.mubr.f32.gmra.mrb[0].mxu0 %v588
  %v590 = vpop.f32.mrb[0].mxu0
  %v591 = vadd.f32 0.0, %v590
  %v592 = vpop.f32.mrb[0].mxu0
  %593 = vmatprep.mubr.f32.mxu0 0.0
  %v594 = vand.u32 %v211, 4294901760
  %v595 = vsub.f32 %v211, %v594
  %v596 = vand.u32 %v595, 4294901760
  %v597 = vsub.f32 %v595, %v596
  %v598 = vand.u32 %v597, 4294901760
  %599 = vmatmul.mubr.f32.gmra.mrb[0].mxu0 %v598
  %v600 = vpop.f32.mrb[0].mxu0
  %v601 = vadd.f32 0.0, %v600
  %v602 = vpop.f32.mrb[0].mxu0
  %603 = vmatprep.mubr.f32.mxu0 0.0
  %v604 = vand.u32 %v212, 4294901760
  %v605 = vsub.f32 %v212, %v604
  %v606 = vand.u32 %v605, 4294901760
  %v607 = vsub.f32 %v605, %v606
  %v608 = vand.u32 %v607, 4294901760
  %609 = vmatmul.mubr.f32.gmra.mrb[0].mxu0 %v608
  %v610 = vpop.f32.mrb[0].mxu0
  %v611 = vadd.f32 0.0, %v610
  %v612 = vpop.f32.mrb[0].mxu0
  %613 = vdwg.mxu0
  %614 = vmatprep.subr.mxu0 0.0
  %v615 = vand.u32 %v133, 4294901760
  %v616 = vsub.f32 %v133, %v615
  %v617 = vand.u32 %v616, 4294901760
  %v618 = vsub.f32 %v616, %v617
  %v619 = vand.u32 %v618, 4294901760
  %620 = vmatpush1.msra.mxu0 %v619
  %621 = vmatprep.subr.mxu0 0.0
  %v622 = vand.u32 %v134, 4294901760
  %v623 = vsub.f32 %v134, %v622
  %v624 = vand.u32 %v623, 4294901760
  %v625 = vsub.f32 %v623, %v624
  %v626 = vand.u32 %v625, 4294901760
  %627 = vmatpush1.msra.mxu0 %v626
  %628 = vmatprep.subr.mxu0 0.0
  %v629 = vand.u32 %v135, 4294901760
  %v630 = vsub.f32 %v135, %v629
  %v631 = vand.u32 %v630, 4294901760
  %v632 = vsub.f32 %v630, %v631
  %v633 = vand.u32 %v632, 4294901760
  %634 = vmatpush1.msra.mxu0 %v633
  %635 = vmatprep.subr.mxu0 0.0
  %v636 = vand.u32 %v136, 4294901760
  %v637 = vsub.f32 %v136, %v636
  %v638 = vand.u32 %v637, 4294901760
  %v639 = vsub.f32 %v637, %v638
  %v640 = vand.u32 %v639, 4294901760
  %641 = vmatpush1.msra.mxu0 %v640
  %642 = vmatprep.subr.mxu0 0.0
  %v643 = vand.u32 %v137, 4294901760
  %v644 = vsub.f32 %v137, %v643
  %v645 = vand.u32 %v644, 4294901760
  %v646 = vsub.f32 %v644, %v645
  %v647 = vand.u32 %v646, 4294901760
  %648 = vmatpush1.msra.mxu0 %v647
  %649 = vmatprep.subr.mxu0 0.0
  %v650 = vand.u32 %v138, 4294901760
  %v651 = vsub.f32 %v138, %v650
  %v652 = vand.u32 %v651, 4294901760
  %v653 = vsub.f32 %v651, %v652
  %v654 = vand.u32 %v653, 4294901760
  %655 = vmatpush1.msra.mxu0 %v654
  %656 = vmatprep.subr.mxu0 0.0
  %v657 = vand.u32 %v139, 4294901760
  %v658 = vsub.f32 %v139, %v657
  %v659 = vand.u32 %v658, 4294901760
  %v660 = vsub.f32 %v658, %v659
  %v661 = vand.u32 %v660, 4294901760
  %662 = vmatpush1.msra.mxu0 %v661
  %663 = vmatprep.subr.mxu0 0.0
  %v664 = vand.u32 %v140, 4294901760
  %v665 = vsub.f32 %v140, %v664
  %v666 = vand.u32 %v665, 4294901760
  %v667 = vsub.f32 %v665, %v666
  %v668 = vand.u32 %v667, 4294901760
  %669 = vmatpush1.msra.mxu0 %v668
  %670 = vmatprep.subr.mxu0 0.0
  %v671 = vand.u32 %v141, 4294901760
  %v672 = vsub.f32 %v141, %v671
  %v673 = vand.u32 %v672, 4294901760
  %v674 = vsub.f32 %v672, %v673
  %v675 = vand.u32 %v674, 4294901760
  %676 = vmatpush1.msra.mxu0 %v675
  %677 = vmatprep.subr.mxu0 0.0
  %v678 = vand.u32 %v142, 4294901760
  %v679 = vsub.f32 %v142, %v678
  %v680 = vand.u32 %v679, 4294901760
  %v681 = vsub.f32 %v679, %v680
  %v682 = vand.u32 %v681, 4294901760
  %683 = vmatpush1.msra.mxu0 %v682
  %684 = vmatprep.subr.mxu0 0.0
  %v685 = vand.u32 %v143, 4294901760
  %v686 = vsub.f32 %v143, %v685
  %v687 = vand.u32 %v686, 4294901760
  %v688 = vsub.f32 %v686, %v687
  %v689 = vand.u32 %v688, 4294901760
  %690 = vmatpush1.msra.mxu0 %v689
  %691 = vmatprep.subr.mxu0 0.0
  %v692 = vand.u32 %v144, 4294901760
  %v693 = vsub.f32 %v144, %v692
  %v694 = vand.u32 %v693, 4294901760
  %v695 = vsub.f32 %v693, %v694
  %v696 = vand.u32 %v695, 4294901760
  %697 = vmatpush1.msra.mxu0 %v696
  %698 = vmatprep.subr.mxu0 0.0
  %v699 = vand.u32 %v145, 4294901760
  %v700 = vsub.f32 %v145, %v699
  %v701 = vand.u32 %v700, 4294901760
  %v702 = vsub.f32 %v700, %v701
  %v703 = vand.u32 %v702, 4294901760
  %704 = vmatpush1.msra.mxu0 %v703
  %705 = vmatprep.subr.mxu0 0.0
  %v706 = vand.u32 %v146, 4294901760
  %v707 = vsub.f32 %v146, %v706
  %v708 = vand.u32 %v707, 4294901760
  %v709 = vsub.f32 %v707, %v708
  %v710 = vand.u32 %v709, 4294901760
  %711 = vmatpush1.msra.mxu0 %v710
  %712 = vmatprep.subr.mxu0 0.0
  %v713 = vand.u32 %v147, 4294901760
  %v714 = vsub.f32 %v147, %v713
  %v715 = vand.u32 %v714, 4294901760
  %v716 = vsub.f32 %v714, %v715
  %v717 = vand.u32 %v716, 4294901760
  %718 = vmatpush1.msra.mxu0 %v717
  %719 = vmatprep.subr.mxu0 0.0
  %v720 = vand.u32 %v148, 4294901760
  %v721 = vsub.f32 %v148, %v720
  %v722 = vand.u32 %v721, 4294901760
  %v723 = vsub.f32 %v721, %v722
  %v724 = vand.u32 %v723, 4294901760
  %725 = vmatpush1.msra.mxu0 %v724
  %726 = vmatprep.subr.mxu0 0.0
  %727 = vmatpush1.msra.mxu0 0.0
  %728 = vmatprep.subr.mxu0 0.0
  %729 = vmatpush1.msra.mxu0 0.0
  %730 = vmatprep.subr.mxu0 0.0
  %731 = vmatpush1.msra.mxu0 0.0
  %732 = vmatprep.subr.mxu0 0.0
  %733 = vmatpush1.msra.mxu0 0.0
  %734 = vmatprep.subr.mxu0 0.0
  %735 = vmatpush1.msra.mxu0 0.0
  %736 = vmatprep.subr.mxu0 0.0
  %737 = vmatpush1.msra.mxu0 0.0
  %738 = vmatprep.subr.mxu0 0.0
  %739 = vmatpush1.msra.mxu0 0.0
  %740 = vmatprep.subr.mxu0 0.0
  %741 = vmatpush1.msra.mxu0 0.0
  %742 = vmatprep.subr.mxu0 0.0
  %743 = vmatpush1.msra.mxu0 0.0
  %744 = vmatprep.subr.mxu0 0.0
  %745 = vmatpush1.msra.mxu0 0.0
  %746 = vmatprep.subr.mxu0 0.0
  %747 = vmatpush1.msra.mxu0 0.0
  %748 = vmatprep.subr.mxu0 0.0
  %749 = vmatpush1.msra.mxu0 0.0
  %750 = vmatprep.subr.mxu0 0.0
  %751 = vmatpush1.msra.mxu0 0.0
  %752 = vmatprep.subr.mxu0 0.0
  %753 = vmatpush1.msra.mxu0 0.0
  %754 = vmatprep.subr.mxu0 0.0
  %755 = vmatpush1.msra.mxu0 0.0
  %756 = vmatprep.subr.mxu0 0.0
  %757 = vmatpush1.msra.mxu0 0.0
  %758 = vmatprep.mubr.f32.mxu0 0.0
  %v759 = vand.u32 %v165, 4294901760
  %760 = vmatmul.mubr.f32.gmra.mrb[0].mxu0 %v759
  %v761 = vpop.f32.mrb[0].mxu0
  %v762 = vadd.f32 %v301, %v761
  %v763 = vpop.f32.mrb[0].mxu0
  %764 = vmatprep.mubr.f32.mxu0 0.0
  %v765 = vand.u32 %v166, 4294901760
  %766 = vmatmul.mubr.f32.gmra.mrb[0].mxu0 %v765
  %v767 = vpop.f32.mrb[0].mxu0
  %v768 = vadd.f32 %v311, %v767
  %v769 = vpop.f32.mrb[0].mxu0
  %770 = vmatprep.mubr.f32.mxu0 0.0
  %v771 = vand.u32 %v167, 4294901760
  %772 = vmatmul.mubr.f32.gmra.mrb[0].mxu0 %v771
  %v773 = vpop.f32.mrb[0].mxu0
  %v774 = vadd.f32 %v321, %v773
  %v775 = vpop.f32.mrb[0].mxu0
  %776 = vmatprep.mubr.f32.mxu0 0.0
  %v777 = vand.u32 %v168, 4294901760
  %778 = vmatmul.mubr.f32.gmra.mrb[0].mxu0 %v777
  %v779 = vpop.f32.mrb[0].mxu0
  %v780 = vadd.f32 %v331, %v779
  %v781 = vpop.f32.mrb[0].mxu0
  %782 = vmatprep.mubr.f32.mxu0 0.0
  %v783 = vand.u32 %v169, 4294901760
  %784 = vmatmul.mubr.f32.gmra.mrb[0].mxu0 %v783
  %v785 = vpop.f32.mrb[0].mxu0
  %v786 = vadd.f32 %v341, %v785
  %v787 = vpop.f32.mrb[0].mxu0
  %788 = vmatprep.mubr.f32.mxu0 0.0
  %v789 = vand.u32 %v170, 4294901760
  %790 = vmatmul.mubr.f32.gmra.mrb[0].mxu0 %v789
  %v791 = vpop.f32.mrb[0].mxu0
  %v792 = vadd.f32 %v351, %v791
  %v793 = vpop.f32.mrb[0].mxu0
  %794 = vmatprep.mubr.f32.mxu0 0.0
  %v795 = vand.u32 %v171, 4294901760
  %796 = vmatmul.mubr.f32.gmra.mrb[0].mxu0 %v795
  %v797 = vpop.f32.mrb[0].mxu0
  %v798 = vadd.f32 %v361, %v797
  %v799 = vpop.f32.mrb[0].mxu0
  %800 = vmatprep.mubr.f32.mxu0 0.0
  %v801 = vand.u32 %v172, 4294901760
  %802 = vmatmul.mubr.f32.gmra.mrb[0].mxu0 %v801
  %v803 = vpop.f32.mrb[0].mxu0
  %v804 = vadd.f32 %v371, %v803
  %v805 = vpop.f32.mrb[0].mxu0
  %806 = vmatprep.mubr.f32.mxu0 0.0
  %v807 = vand.u32 %v173, 4294901760
  %808 = vmatmul.mubr.f32.gmra.mrb[0].mxu0 %v807
  %v809 = vpop.f32.mrb[0].mxu0
  %v810 = vadd.f32 %v381, %v809
  %v811 = vpop.f32.mrb[0].mxu0
  %812 = vmatprep.mubr.f32.mxu0 0.0
  %v813 = vand.u32 %v174, 4294901760
  %814 = vmatmul.mubr.f32.gmra.mrb[0].mxu0 %v813
  %v815 = vpop.f32.mrb[0].mxu0
  %v816 = vadd.f32 %v391, %v815
  %v817 = vpop.f32.mrb[0].mxu0
  %818 = vmatprep.mubr.f32.mxu0 0.0
  %v819 = vand.u32 %v175, 4294901760
  %820 = vmatmul.mubr.f32.gmra.mrb[0].mxu0 %v819
  %v821 = vpop.f32.mrb[0].mxu0
  %v822 = vadd.f32 %v401, %v821
  %v823 = vpop.f32.mrb[0].mxu0
  %824 = vmatprep.mubr.f32.mxu0 0.0
  %v825 = vand.u32 %v176, 4294901760
  %826 = vmatmul.mubr.f32.gmra.mrb[0].mxu0 %v825
  %v827 = vpop.f32.mrb[0].mxu0
  %v828 = vadd.f32 %v411, %v827
  %v829 = vpop.f32.mrb[0].mxu0
  %830 = vmatprep.mubr.f32.mxu0 0.0
  %v831 = vand.u32 %v177, 4294901760
  %832 = vmatmul.mubr.f32.gmra.mrb[0].mxu0 %v831
  %v833 = vpop.f32.mrb[0].mxu0
  %v834 = vadd.f32 %v421, %v833
  %v835 = vpop.f32.mrb[0].mxu0
  %836 = vmatprep.mubr.f32.mxu0 0.0
  %v837 = vand.u32 %v178, 4294901760
  %838 = vmatmul.mubr.f32.gmra.mrb[0].mxu0 %v837
  %v839 = vpop.f32.mrb[0].mxu0
  %v840 = vadd.f32 %v431, %v839
  %v841 = vpop.f32.mrb[0].mxu0
  %842 = vmatprep.mubr.f32.mxu0 0.0
  %v843 = vand.u32 %v179, 4294901760
  %844 = vmatmul.mubr.f32.gmra.mrb[0].mxu0 %v843
  %v845 = vpop.f32.mrb[0].mxu0
  %v846 = vadd.f32 %v441, %v845
  %v847 = vpop.f32.mrb[0].mxu0
  %848 = vmatprep.mubr.f32.mxu0 0.0
  %v849 = vand.u32 %v180, 4294901760
  %850 = vmatmul.mubr.f32.gmra.mrb[0].mxu0 %v849
  %v851 = vpop.f32.mrb[0].mxu0
  %v852 = vadd.f32 %v451, %v851
  %v853 = vpop.f32.mrb[0].mxu0
  %854 = vmatprep.mubr.f32.mxu0 0.0
  %v855 = vand.u32 %v197, 4294901760
  %856 = vmatmul.mubr.f32.gmra.mrb[0].mxu0 %v855
  %v857 = vpop.f32.mrb[0].mxu0
  %v858 = vadd.f32 %v461, %v857
  %v859 = vpop.f32.mrb[0].mxu0
  %860 = vmatprep.mubr.f32.mxu0 0.0
  %v861 = vand.u32 %v198, 4294901760
  %862 = vmatmul.mubr.f32.gmra.mrb[0].mxu0 %v861
  %v863 = vpop.f32.mrb[0].mxu0
  %v864 = vadd.f32 %v471, %v863
  %v865 = vpop.f32.mrb[0].mxu0
  %866 = vmatprep.mubr.f32.mxu0 0.0
  %v867 = vand.u32 %v199, 4294901760
  %868 = vmatmul.mubr.f32.gmra.mrb[0].mxu0 %v867
  %v869 = vpop.f32.mrb[0].mxu0
  %v870 = vadd.f32 %v481, %v869
  %v871 = vpop.f32.mrb[0].mxu0
  %872 = vmatprep.mubr.f32.mxu0 0.0
  %v873 = vand.u32 %v200, 4294901760
  %874 = vmatmul.mubr.f32.gmra.mrb[0].mxu0 %v873
  %v875 = vpop.f32.mrb[0].mxu0
  %v876 = vadd.f32 %v491, %v875
  %v877 = vpop.f32.mrb[0].mxu0
  %878 = vmatprep.mubr.f32.mxu0 0.0
  %v879 = vand.u32 %v201, 4294901760
  %880 = vmatmul.mubr.f32.gmra.mrb[0].mxu0 %v879
  %v881 = vpop.f32.mrb[0].mxu0
  %v882 = vadd.f32 %v501, %v881
  %v883 = vpop.f32.mrb[0].mxu0
  %884 = vmatprep.mubr.f32.mxu0 0.0
  %v885 = vand.u32 %v202, 4294901760
  %886 = vmatmul.mubr.f32.gmra.mrb[0].mxu0 %v885
  %v887 = vpop.f32.mrb[0].mxu0
  %v888 = vadd.f32 %v511, %v887
  %v889 = vpop.f32.mrb[0].mxu0
  %890 = vmatprep.mubr.f32.mxu0 0.0
  %v891 = vand.u32 %v203, 4294901760
  %892 = vmatmul.mubr.f32.gmra.mrb[0].mxu0 %v891
  %v893 = vpop.f32.mrb[0].mxu0
  %v894 = vadd.f32 %v521, %v893
  %v895 = vpop.f32.mrb[0].mxu0
  %896 = vmatprep.mubr.f32.mxu0 0.0
  %v897 = vand.u32 %v204, 4294901760
  %898 = vmatmul.mubr.f32.gmra.mrb[0].mxu0 %v897
  %v899 = vpop.f32.mrb[0].mxu0
  %v900 = vadd.f32 %v531, %v899
  %v901 = vpop.f32.mrb[0].mxu0
  %902 = vmatprep.mubr.f32.mxu0 0.0
  %v903 = vand.u32 %v205, 4294901760
  %904 = vmatmul.mubr.f32.gmra.mrb[0].mxu0 %v903
  %v905 = vpop.f32.mrb[0].mxu0
  %v906 = vadd.f32 %v541, %v905
  %v907 = vpop.f32.mrb[0].mxu0
  %908 = vmatprep.mubr.f32.mxu0 0.0
  %v909 = vand.u32 %v206, 4294901760
  %910 = vmatmul.mubr.f32.gmra.mrb[0].mxu0 %v909
  %v911 = vpop.f32.mrb[0].mxu0
  %v912 = vadd.f32 %v551, %v911
  %v913 = vpop.f32.mrb[0].mxu0
  %914 = vmatprep.mubr.f32.mxu0 0.0
  %v915 = vand.u32 %v207, 4294901760
  %916 = vmatmul.mubr.f32.gmra.mrb[0].mxu0 %v915
  %v917 = vpop.f32.mrb[0].mxu0
  %v918 = vadd.f32 %v561, %v917
  %v919 = vpop.f32.mrb[0].mxu0
  %920 = vmatprep.mubr.f32.mxu0 0.0
  %v921 = vand.u32 %v208, 4294901760
  %922 = vmatmul.mubr.f32.gmra.mrb[0].mxu0 %v921
  %v923 = vpop.f32.mrb[0].mxu0
  %v924 = vadd.f32 %v571, %v923
  %v925 = vpop.f32.mrb[0].mxu0
  %926 = vmatprep.mubr.f32.mxu0 0.0
  %v927 = vand.u32 %v209, 4294901760
  %928 = vmatmul.mubr.f32.gmra.mrb[0].mxu0 %v927
  %v929 = vpop.f32.mrb[0].mxu0
  %v930 = vadd.f32 %v581, %v929
  %v931 = vpop.f32.mrb[0].mxu0
  %932 = vmatprep.mubr.f32.mxu0 0.0
  %v933 = vand.u32 %v210, 4294901760
  %934 = vmatmul.mubr.f32.gmra.mrb[0].mxu0 %v933
  %v935 = vpop.f32.mrb[0].mxu0
  %v936 = vadd.f32 %v591, %v935
  %v937 = vpop.f32.mrb[0].mxu0
  %938 = vmatprep.mubr.f32.mxu0 0.0
  %v939 = vand.u32 %v211, 4294901760
  %940 = vmatmul.mubr.f32.gmra.mrb[0].mxu0 %v939
  %v941 = vpop.f32.mrb[0].mxu0
  %v942 = vadd.f32 %v601, %v941
  %v943 = vpop.f32.mrb[0].mxu0
  %944 = vmatprep.mubr.f32.mxu0 0.0
  %v945 = vand.u32 %v212, 4294901760
  %946 = vmatmul.mubr.f32.gmra.mrb[0].mxu0 %v945
  %v947 = vpop.f32.mrb[0].mxu0
  %v948 = vadd.f32 %v611, %v947
  %v949 = vpop.f32.mrb[0].mxu0
  %950 = vdwg.mxu0
  %951 = vmatprep.subr.mxu0 0.0
  %v952 = vand.u32 %v133, 4294901760
  %v953 = vsub.f32 %v133, %v952
  %954 = vmatpush1.msra.mxu0 %v953
  %955 = vmatprep.subr.mxu0 0.0
  %v956 = vand.u32 %v134, 4294901760
  %v957 = vsub.f32 %v134, %v956
  %958 = vmatpush1.msra.mxu0 %v957
  %959 = vmatprep.subr.mxu0 0.0
  %v960 = vand.u32 %v135, 4294901760
  %v961 = vsub.f32 %v135, %v960
  %962 = vmatpush1.msra.mxu0 %v961
  %963 = vmatprep.subr.mxu0 0.0
  %v964 = vand.u32 %v136, 4294901760
  %v965 = vsub.f32 %v136, %v964
  %966 = vmatpush1.msra.mxu0 %v965
  %967 = vmatprep.subr.mxu0 0.0
  %v968 = vand.u32 %v137, 4294901760
  %v969 = vsub.f32 %v137, %v968
  %970 = vmatpush1.msra.mxu0 %v969
  %971 = vmatprep.subr.mxu0 0.0
  %v972 = vand.u32 %v138, 4294901760
  %v973 = vsub.f32 %v138, %v972
  %974 = vmatpush1.msra.mxu0 %v973
  %975 = vmatprep.subr.mxu0 0.0
  %v976 = vand.u32 %v139, 4294901760
  %v977 = vsub.f32 %v139, %v976
  %978 = vmatpush1.msra.mxu0 %v977
  %979 = vmatprep.subr.mxu0 0.0
  %v980 = vand.u32 %v140, 4294901760
  %v981 = vsub.f32 %v140, %v980
  %982 = vmatpush1.msra.mxu0 %v981
  %983 = vmatprep.subr.mxu0 0.0
  %v984 = vand.u32 %v141, 4294901760
  %v985 = vsub.f32 %v141, %v984
  %986 = vmatpush1.msra.mxu0 %v985
  %987 = vmatprep.subr.mxu0 0.0
  %v988 = vand.u32 %v142, 4294901760
  %v989 = vsub.f32 %v142, %v988
  %990 = vmatpush1.msra.mxu0 %v989
  %991 = vmatprep.subr.mxu0 0.0
  %v992 = vand.u32 %v143, 4294901760
  %v993 = vsub.f32 %v143, %v992
  %994 = vmatpush1.msra.mxu0 %v993
  %995 = vmatprep.subr.mxu0 0.0
  %v996 = vand.u32 %v144, 4294901760
  %v997 = vsub.f32 %v144, %v996
  %998 = vmatpush1.msra.mxu0 %v997
  %999 = vmatprep.subr.mxu0 0.0
  %v1000 = vand.u32 %v145, 4294901760
  %v1001 = vsub.f32 %v145, %v1000
  %1002 = vmatpush1.msra.mxu0 %v1001
  %1003 = vmatprep.subr.mxu0 0.0
  %v1004 = vand.u32 %v146, 4294901760
  %v1005 = vsub.f32 %v146, %v1004
  %1006 = vmatpush1.msra.mxu0 %v1005
  %1007 = vmatprep.subr.mxu0 0.0
  %v1008 = vand.u32 %v147, 4294901760
  %v1009 = vsub.f32 %v147, %v1008
  %1010 = vmatpush1.msra.mxu0 %v1009
  %1011 = vmatprep.subr.mxu0 0.0
  %v1012 = vand.u32 %v148, 4294901760
  %v1013 = vsub.f32 %v148, %v1012
  %1014 = vmatpush1.msra.mxu0 %v1013
  %1015 = vmatprep.subr.mxu0 0.0
  %1016 = vmatpush1.msra.mxu0 0.0
  %1017 = vmatprep.subr.mxu0 0.0
  %1018 = vmatpush1.msra.mxu0 0.0
  %1019 = vmatprep.subr.mxu0 0.0
  %1020 = vmatpush1.msra.mxu0 0.0
  %1021 = vmatprep.subr.mxu0 0.0
  %1022 = vmatpush1.msra.mxu0 0.0
  %1023 = vmatprep.subr.mxu0 0.0
  %1024 = vmatpush1.msra.mxu0 0.0
  %1025 = vmatprep.subr.mxu0 0.0
  %1026 = vmatpush1.msra.mxu0 0.0
  %1027 = vmatprep.subr.mxu0 0.0
  %1028 = vmatpush1.msra.mxu0 0.0
  %1029 = vmatprep.subr.mxu0 0.0
  %1030 = vmatpush1.msra.mxu0 0.0
  %1031 = vmatprep.subr.mxu0 0.0
  %1032 = vmatpush1.msra.mxu0 0.0
  %1033 = vmatprep.subr.mxu0 0.0
  %1034 = vmatpush1.msra.mxu0 0.0
  %1035 = vmatprep.subr.mxu0 0.0
  %1036 = vmatpush1.msra.mxu0 0.0
  %1037 = vmatprep.subr.mxu0 0.0
  %1038 = vmatpush1.msra.mxu0 0.0
  %1039 = vmatprep.subr.mxu0 0.0
  %1040 = vmatpush1.msra.mxu0 0.0
  %1041 = vmatprep.subr.mxu0 0.0
  %1042 = vmatpush1.msra.mxu0 0.0
  %1043 = vmatprep.subr.mxu0 0.0
  %1044 = vmatpush1.msra.mxu0 0.0
  %1045 = vmatprep.subr.mxu0 0.0
  %1046 = vmatpush1.msra.mxu0 0.0
  %1047 = vmatprep.mubr.f32.mxu0 0.0
  %v1048 = vand.u32 %v165, 4294901760
  %v1049 = vsub.f32 %v165, %v1048
  %1050 = vmatmul.mubr.f32.gmra.mrb[0].mxu0 %v1049
  %v1051 = vpop.f32.mrb[0].mxu0
  %v1052 = vadd.f32 %v762, %v1051
  %v1053 = vpop.f32.mrb[0].mxu0
  %1054 = vmatprep.mubr.f32.mxu0 0.0
  %v1055 = vand.u32 %v166, 4294901760
  %v1056 = vsub.f32 %v166, %v1055
  %1057 = vmatmul.mubr.f32.gmra.mrb[0].mxu0 %v1056
  %v1058 = vpop.f32.mrb[0].mxu0
  %v1059 = vadd.f32 %v768, %v1058
  %v1060 = vpop.f32.mrb[0].mxu0
  %1061 = vmatprep.mubr.f32.mxu0 0.0
  %v1062 = vand.u32 %v167, 4294901760
  %v1063 = vsub.f32 %v167, %v1062
  %1064 = vmatmul.mubr.f32.gmra.mrb[0].mxu0 %v1063
  %v1065 = vpop.f32.mrb[0].mxu0
  %v1066 = vadd.f32 %v774, %v1065
  %v1067 = vpop.f32.mrb[0].mxu0
  %1068 = vmatprep.mubr.f32.mxu0 0.0
  %v1069 = vand.u32 %v168, 4294901760
  %v1070 = vsub.f32 %v168, %v1069
  %1071 = vmatmul.mubr.f32.gmra.mrb[0].mxu0 %v1070
  %v1072 = vpop.f32.mrb[0].mxu0
  %v1073 = vadd.f32 %v780, %v1072
  %v1074 = vpop.f32.mrb[0].mxu0
  %1075 = vmatprep.mubr.f32.mxu0 0.0
  %v1076 = vand.u32 %v169, 4294901760
  %v1077 = vsub.f32 %v169, %v1076
  %1078 = vmatmul.mubr.f32.gmra.mrb[0].mxu0 %v1077
  %v1079 = vpop.f32.mrb[0].mxu0
  %v1080 = vadd.f32 %v786, %v1079
  %v1081 = vpop.f32.mrb[0].mxu0
  %1082 = vmatprep.mubr.f32.mxu0 0.0
  %v1083 = vand.u32 %v170, 4294901760
  %v1084 = vsub.f32 %v170, %v1083
  %1085 = vmatmul.mubr.f32.gmra.mrb[0].mxu0 %v1084
  %v1086 = vpop.f32.mrb[0].mxu0
  %v1087 = vadd.f32 %v792, %v1086
  %v1088 = vpop.f32.mrb[0].mxu0
  %1089 = vmatprep.mubr.f32.mxu0 0.0
  %v1090 = vand.u32 %v171, 4294901760
  %v1091 = vsub.f32 %v171, %v1090
  %1092 = vmatmul.mubr.f32.gmra.mrb[0].mxu0 %v1091
  %v1093 = vpop.f32.mrb[0].mxu0
  %v1094 = vadd.f32 %v798, %v1093
  %v1095 = vpop.f32.mrb[0].mxu0
  %1096 = vmatprep.mubr.f32.mxu0 0.0
  %v1097 = vand.u32 %v172, 4294901760
  %v1098 = vsub.f32 %v172, %v1097
  %1099 = vmatmul.mubr.f32.gmra.mrb[0].mxu0 %v1098
  %v1100 = vpop.f32.mrb[0].mxu0
  %v1101 = vadd.f32 %v804, %v1100
  %v1102 = vpop.f32.mrb[0].mxu0
  %1103 = vmatprep.mubr.f32.mxu0 0.0
  %v1104 = vand.u32 %v173, 4294901760
  %v1105 = vsub.f32 %v173, %v1104
  %1106 = vmatmul.mubr.f32.gmra.mrb[0].mxu0 %v1105
  %v1107 = vpop.f32.mrb[0].mxu0
  %v1108 = vadd.f32 %v810, %v1107
  %v1109 = vpop.f32.mrb[0].mxu0
  %1110 = vmatprep.mubr.f32.mxu0 0.0
  %v1111 = vand.u32 %v174, 4294901760
  %v1112 = vsub.f32 %v174, %v1111
  %1113 = vmatmul.mubr.f32.gmra.mrb[0].mxu0 %v1112
  %v1114 = vpop.f32.mrb[0].mxu0
  %v1115 = vadd.f32 %v816, %v1114
  %v1116 = vpop.f32.mrb[0].mxu0
  %1117 = vmatprep.mubr.f32.mxu0 0.0
  %v1118 = vand.u32 %v175, 4294901760
  %v1119 = vsub.f32 %v175, %v1118
  %1120 = vmatmul.mubr.f32.gmra.mrb[0].mxu0 %v1119
  %v1121 = vpop.f32.mrb[0].mxu0
  %v1122 = vadd.f32 %v822, %v1121
  %v1123 = vpop.f32.mrb[0].mxu0
  %1124 = vmatprep.mubr.f32.mxu0 0.0
  %v1125 = vand.u32 %v176, 4294901760
  %v1126 = vsub.f32 %v176, %v1125
  %1127 = vmatmul.mubr.f32.gmra.mrb[0].mxu0 %v1126
  %v1128 = vpop.f32.mrb[0].mxu0
  %v1129 = vadd.f32 %v828, %v1128
  %v1130 = vpop.f32.mrb[0].mxu0
  %1131 = vmatprep.mubr.f32.mxu0 0.0
  %v1132 = vand.u32 %v177, 4294901760
  %v1133 = vsub.f32 %v177, %v1132
  %1134 = vmatmul.mubr.f32.gmra.mrb[0].mxu0 %v1133
  %v1135 = vpop.f32.mrb[0].mxu0
  %v1136 = vadd.f32 %v834, %v1135
  %v1137 = vpop.f32.mrb[0].mxu0
  %1138 = vmatprep.mubr.f32.mxu0 0.0
  %v1139 = vand.u32 %v178, 4294901760
  %v1140 = vsub.f32 %v178, %v1139
  %1141 = vmatmul.mubr.f32.gmra.mrb[0].mxu0 %v1140
  %v1142 = vpop.f32.mrb[0].mxu0
  %v1143 = vadd.f32 %v840, %v1142
  %v1144 = vpop.f32.mrb[0].mxu0
  %1145 = vmatprep.mubr.f32.mxu0 0.0
  %v1146 = vand.u32 %v179, 4294901760
  %v1147 = vsub.f32 %v179, %v1146
  %1148 = vmatmul.mubr.f32.gmra.mrb[0].mxu0 %v1147
  %v1149 = vpop.f32.mrb[0].mxu0
  %v1150 = vadd.f32 %v846, %v1149
  %v1151 = vpop.f32.mrb[0].mxu0
  %1152 = vmatprep.mubr.f32.mxu0 0.0
  %v1153 = vand.u32 %v180, 4294901760
  %v1154 = vsub.f32 %v180, %v1153
  %1155 = vmatmul.mubr.f32.gmra.mrb[0].mxu0 %v1154
  %v1156 = vpop.f32.mrb[0].mxu0
  %v1157 = vadd.f32 %v852, %v1156
  %v1158 = vpop.f32.mrb[0].mxu0
  %1159 = vmatprep.mubr.f32.mxu0 0.0
  %v1160 = vand.u32 %v197, 4294901760
  %v1161 = vsub.f32 %v197, %v1160
  %1162 = vmatmul.mubr.f32.gmra.mrb[0].mxu0 %v1161
  %v1163 = vpop.f32.mrb[0].mxu0
  %v1164 = vadd.f32 %v858, %v1163
  %v1165 = vpop.f32.mrb[0].mxu0
  %1166 = vmatprep.mubr.f32.mxu0 0.0
  %v1167 = vand.u32 %v198, 4294901760
  %v1168 = vsub.f32 %v198, %v1167
  %1169 = vmatmul.mubr.f32.gmra.mrb[0].mxu0 %v1168
  %v1170 = vpop.f32.mrb[0].mxu0
  %v1171 = vadd.f32 %v864, %v1170
  %v1172 = vpop.f32.mrb[0].mxu0
  %1173 = vmatprep.mubr.f32.mxu0 0.0
  %v1174 = vand.u32 %v199, 4294901760
  %v1175 = vsub.f32 %v199, %v1174
  %1176 = vmatmul.mubr.f32.gmra.mrb[0].mxu0 %v1175
  %v1177 = vpop.f32.mrb[0].mxu0
  %v1178 = vadd.f32 %v870, %v1177
  %v1179 = vpop.f32.mrb[0].mxu0
  %1180 = vmatprep.mubr.f32.mxu0 0.0
  %v1181 = vand.u32 %v200, 4294901760
  %v1182 = vsub.f32 %v200, %v1181
  %1183 = vmatmul.mubr.f32.gmra.mrb[0].mxu0 %v1182
  %v1184 = vpop.f32.mrb[0].mxu0
  %v1185 = vadd.f32 %v876, %v1184
  %v1186 = vpop.f32.mrb[0].mxu0
  %1187 = vmatprep.mubr.f32.mxu0 0.0
  %v1188 = vand.u32 %v201, 4294901760
  %v1189 = vsub.f32 %v201, %v1188
  %1190 = vmatmul.mubr.f32.gmra.mrb[0].mxu0 %v1189
  %v1191 = vpop.f32.mrb[0].mxu0
  %v1192 = vadd.f32 %v882, %v1191
  %v1193 = vpop.f32.mrb[0].mxu0
  %1194 = vmatprep.mubr.f32.mxu0 0.0
  %v1195 = vand.u32 %v202, 4294901760
  %v1196 = vsub.f32 %v202, %v1195
  %1197 = vmatmul.mubr.f32.gmra.mrb[0].mxu0 %v1196
  %v1198 = vpop.f32.mrb[0].mxu0
  %v1199 = vadd.f32 %v888, %v1198
  %v1200 = vpop.f32.mrb[0].mxu0
  %1201 = vmatprep.mubr.f32.mxu0 0.0
  %v1202 = vand.u32 %v203, 4294901760
  %v1203 = vsub.f32 %v203, %v1202
  %1204 = vmatmul.mubr.f32.gmra.mrb[0].mxu0 %v1203
  %v1205 = vpop.f32.mrb[0].mxu0
  %v1206 = vadd.f32 %v894, %v1205
  %v1207 = vpop.f32.mrb[0].mxu0
  %1208 = vmatprep.mubr.f32.mxu0 0.0
  %v1209 = vand.u32 %v204, 4294901760
  %v1210 = vsub.f32 %v204, %v1209
  %1211 = vmatmul.mubr.f32.gmra.mrb[0].mxu0 %v1210
  %v1212 = vpop.f32.mrb[0].mxu0
  %v1213 = vadd.f32 %v900, %v1212
  %v1214 = vpop.f32.mrb[0].mxu0
  %1215 = vmatprep.mubr.f32.mxu0 0.0
  %v1216 = vand.u32 %v205, 4294901760
  %v1217 = vsub.f32 %v205, %v1216
  %1218 = vmatmul.mubr.f32.gmra.mrb[0].mxu0 %v1217
  %v1219 = vpop.f32.mrb[0].mxu0
  %v1220 = vadd.f32 %v906, %v1219
  %v1221 = vpop.f32.mrb[0].mxu0
  %1222 = vmatprep.mubr.f32.mxu0 0.0
  %v1223 = vand.u32 %v206, 4294901760
  %v1224 = vsub.f32 %v206, %v1223
  %1225 = vmatmul.mubr.f32.gmra.mrb[0].mxu0 %v1224
  %v1226 = vpop.f32.mrb[0].mxu0
  %v1227 = vadd.f32 %v912, %v1226
  %v1228 = vpop.f32.mrb[0].mxu0
  %1229 = vmatprep.mubr.f32.mxu0 0.0
  %v1230 = vand.u32 %v207, 4294901760
  %v1231 = vsub.f32 %v207, %v1230
  %1232 = vmatmul.mubr.f32.gmra.mrb[0].mxu0 %v1231
  %v1233 = vpop.f32.mrb[0].mxu0
  %v1234 = vadd.f32 %v918, %v1233
  %v1235 = vpop.f32.mrb[0].mxu0
  %1236 = vmatprep.mubr.f32.mxu0 0.0
  %v1237 = vand.u32 %v208, 4294901760
  %v1238 = vsub.f32 %v208, %v1237
  %1239 = vmatmul.mubr.f32.gmra.mrb[0].mxu0 %v1238
  %v1240 = vpop.f32.mrb[0].mxu0
  %v1241 = vadd.f32 %v924, %v1240
  %v1242 = vpop.f32.mrb[0].mxu0
  %1243 = vmatprep.mubr.f32.mxu0 0.0
  %v1244 = vand.u32 %v209, 4294901760
  %v1245 = vsub.f32 %v209, %v1244
  %1246 = vmatmul.mubr.f32.gmra.mrb[0].mxu0 %v1245
  %v1247 = vpop.f32.mrb[0].mxu0
  %v1248 = vadd.f32 %v930, %v1247
  %v1249 = vpop.f32.mrb[0].mxu0
  %1250 = vmatprep.mubr.f32.mxu0 0.0
  %v1251 = vand.u32 %v210, 4294901760
  %v1252 = vsub.f32 %v210, %v1251
  %1253 = vmatmul.mubr.f32.gmra.mrb[0].mxu0 %v1252
  %v1254 = vpop.f32.mrb[0].mxu0
  %v1255 = vadd.f32 %v936, %v1254
  %v1256 = vpop.f32.mrb[0].mxu0
  %1257 = vmatprep.mubr.f32.mxu0 0.0
  %v1258 = vand.u32 %v211, 4294901760
  %v1259 = vsub.f32 %v211, %v1258
  %1260 = vmatmul.mubr.f32.gmra.mrb[0].mxu0 %v1259
  %v1261 = vpop.f32.mrb[0].mxu0
  %v1262 = vadd.f32 %v942, %v1261
  %v1263 = vpop.f32.mrb[0].mxu0
  %1264 = vmatprep.mubr.f32.mxu0 0.0
  %v1265 = vand.u32 %v212, 4294901760
  %v1266 = vsub.f32 %v212, %v1265
  %1267 = vmatmul.mubr.f32.gmra.mrb[0].mxu0 %v1266
  %v1268 = vpop.f32.mrb[0].mxu0
  %v1269 = vadd.f32 %v948, %v1268
  %v1270 = vpop.f32.mrb[0].mxu0
  %1271 = vdwg.mxu0
  %1272 = vmatprep.subr.mxu0 0.0
  %v1273 = vand.u32 %v133, 4294901760
  %1274 = vmatpush1.msra.mxu0 %v1273
  %1275 = vmatprep.subr.mxu0 0.0
  %v1276 = vand.u32 %v134, 4294901760
  %1277 = vmatpush1.msra.mxu0 %v1276
  %1278 = vmatprep.subr.mxu0 0.0
  %v1279 = vand.u32 %v135, 4294901760
  %1280 = vmatpush1.msra.mxu0 %v1279
  %1281 = vmatprep.subr.mxu0 0.0
  %v1282 = vand.u32 %v136, 4294901760
  %1283 = vmatpush1.msra.mxu0 %v1282
  %1284 = vmatprep.subr.mxu0 0.0
  %v1285 = vand.u32 %v137, 4294901760
  %1286 = vmatpush1.msra.mxu0 %v1285
  %1287 = vmatprep.subr.mxu0 0.0
  %v1288 = vand.u32 %v138, 4294901760
  %1289 = vmatpush1.msra.mxu0 %v1288
  %1290 = vmatprep.subr.mxu0 0.0
  %v1291 = vand.u32 %v139, 4294901760
  %1292 = vmatpush1.msra.mxu0 %v1291
  %1293 = vmatprep.subr.mxu0 0.0
  %v1294 = vand.u32 %v140, 4294901760
  %1295 = vmatpush1.msra.mxu0 %v1294
  %1296 = vmatprep.subr.mxu0 0.0
  %v1297 = vand.u32 %v141, 4294901760
  %1298 = vmatpush1.msra.mxu0 %v1297
  %1299 = vmatprep.subr.mxu0 0.0
  %v1300 = vand.u32 %v142, 4294901760
  %1301 = vmatpush1.msra.mxu0 %v1300
  %1302 = vmatprep.subr.mxu0 0.0
  %v1303 = vand.u32 %v143, 4294901760
  %1304 = vmatpush1.msra.mxu0 %v1303
  %1305 = vmatprep.subr.mxu0 0.0
  %v1306 = vand.u32 %v144, 4294901760
  %1307 = vmatpush1.msra.mxu0 %v1306
  %1308 = vmatprep.subr.mxu0 0.0
  %v1309 = vand.u32 %v145, 4294901760
  %1310 = vmatpush1.msra.mxu0 %v1309
  %1311 = vmatprep.subr.mxu0 0.0
  %v1312 = vand.u32 %v146, 4294901760
  %1313 = vmatpush1.msra.mxu0 %v1312
  %1314 = vmatprep.subr.mxu0 0.0
  %v1315 = vand.u32 %v147, 4294901760
  %1316 = vmatpush1.msra.mxu0 %v1315
  %1317 = vmatprep.subr.mxu0 0.0
  %v1318 = vand.u32 %v148, 4294901760
  %1319 = vmatpush1.msra.mxu0 %v1318
  %1320 = vmatprep.subr.mxu0 0.0
  %1321 = vmatpush1.msra.mxu0 0.0
  %1322 = vmatprep.subr.mxu0 0.0
  %1323 = vmatpush1.msra.mxu0 0.0
  %1324 = vmatprep.subr.mxu0 0.0
  %1325 = vmatpush1.msra.mxu0 0.0
  %1326 = vmatprep.subr.mxu0 0.0
  %1327 = vmatpush1.msra.mxu0 0.0
  %1328 = vmatprep.subr.mxu0 0.0
  %1329 = vmatpush1.msra.mxu0 0.0
  %1330 = vmatprep.subr.mxu0 0.0
  %1331 = vmatpush1.msra.mxu0 0.0
  %1332 = vmatprep.subr.mxu0 0.0
  %1333 = vmatpush1.msra.mxu0 0.0
  %1334 = vmatprep.subr.mxu0 0.0
  %1335 = vmatpush1.msra.mxu0 0.0
  %1336 = vmatprep.subr.mxu0 0.0
  %1337 = vmatpush1.msra.mxu0 0.0
  %1338 = vmatprep.subr.mxu0 0.0
  %1339 = vmatpush1.msra.mxu0 0.0
  %1340 = vmatprep.subr.mxu0 0.0
  %1341 = vmatpush1.msra.mxu0 0.0
  %1342 = vmatprep.subr.mxu0 0.0
  %1343 = vmatpush1.msra.mxu0 0.0
  %1344 = vmatprep.subr.mxu0 0.0
  %1345 = vmatpush1.msra.mxu0 0.0
  %1346 = vmatprep.subr.mxu0 0.0
  %1347 = vmatpush1.msra.mxu0 0.0
  %1348 = vmatprep.subr.mxu0 0.0
  %1349 = vmatpush1.msra.mxu0 0.0
  %1350 = vmatprep.subr.mxu0 0.0
  %1351 = vmatpush1.msra.mxu0 0.0
  %1352 = vmatprep.mubr.f32.mxu0 0.0
  %v1353 = vand.u32 %v165, 4294901760
  %v1354 = vsub.f32 %v165, %v1353
  %v1355 = vand.u32 %v1354, 4294901760
  %1356 = vmatmul.mubr.f32.gmra.mrb[0].mxu0 %v1355
  %v1357 = vpop.f32.mrb[0].mxu0
  %v1358 = vadd.f32 %v1052, %v1357
  %v1359 = vpop.f32.mrb[0].mxu0
  %1360 = vmatprep.mubr.f32.mxu0 0.0
  %v1361 = vand.u32 %v166, 4294901760
  %v1362 = vsub.f32 %v166, %v1361
  %v1363 = vand.u32 %v1362, 4294901760
  %1364 = vmatmul.mubr.f32.gmra.mrb[0].mxu0 %v1363
  %v1365 = vpop.f32.mrb[0].mxu0
  %v1366 = vadd.f32 %v1059, %v1365
  %v1367 = vpop.f32.mrb[0].mxu0
  %1368 = vmatprep.mubr.f32.mxu0 0.0
  %v1369 = vand.u32 %v167, 4294901760
  %v1370 = vsub.f32 %v167, %v1369
  %v1371 = vand.u32 %v1370, 4294901760
  %1372 = vmatmul.mubr.f32.gmra.mrb[0].mxu0 %v1371
  %v1373 = vpop.f32.mrb[0].mxu0
  %v1374 = vadd.f32 %v1066, %v1373
  %v1375 = vpop.f32.mrb[0].mxu0
  %1376 = vmatprep.mubr.f32.mxu0 0.0
  %v1377 = vand.u32 %v168, 4294901760
  %v1378 = vsub.f32 %v168, %v1377
  %v1379 = vand.u32 %v1378, 4294901760
  %1380 = vmatmul.mubr.f32.gmra.mrb[0].mxu0 %v1379
  %v1381 = vpop.f32.mrb[0].mxu0
  %v1382 = vadd.f32 %v1073, %v1381
  %v1383 = vpop.f32.mrb[0].mxu0
  %1384 = vmatprep.mubr.f32.mxu0 0.0
  %v1385 = vand.u32 %v169, 4294901760
  %v1386 = vsub.f32 %v169, %v1385
  %v1387 = vand.u32 %v1386, 4294901760
  %1388 = vmatmul.mubr.f32.gmra.mrb[0].mxu0 %v1387
  %v1389 = vpop.f32.mrb[0].mxu0
  %v1390 = vadd.f32 %v1080, %v1389
  %v1391 = vpop.f32.mrb[0].mxu0
  %1392 = vmatprep.mubr.f32.mxu0 0.0
  %v1393 = vand.u32 %v170, 4294901760
  %v1394 = vsub.f32 %v170, %v1393
  %v1395 = vand.u32 %v1394, 4294901760
  %1396 = vmatmul.mubr.f32.gmra.mrb[0].mxu0 %v1395
  %v1397 = vpop.f32.mrb[0].mxu0
  %v1398 = vadd.f32 %v1087, %v1397
  %v1399 = vpop.f32.mrb[0].mxu0
  %1400 = vmatprep.mubr.f32.mxu0 0.0
  %v1401 = vand.u32 %v171, 4294901760
  %v1402 = vsub.f32 %v171, %v1401
  %v1403 = vand.u32 %v1402, 4294901760
  %1404 = vmatmul.mubr.f32.gmra.mrb[0].mxu0 %v1403
  %v1405 = vpop.f32.mrb[0].mxu0
  %v1406 = vadd.f32 %v1094, %v1405
  %v1407 = vpop.f32.mrb[0].mxu0
  %1408 = vmatprep.mubr.f32.mxu0 0.0
  %v1409 = vand.u32 %v172, 4294901760
  %v1410 = vsub.f32 %v172, %v1409
  %v1411 = vand.u32 %v1410, 4294901760
  %1412 = vmatmul.mubr.f32.gmra.mrb[0].mxu0 %v1411
  %v1413 = vpop.f32.mrb[0].mxu0
  %v1414 = vadd.f32 %v1101, %v1413
  %v1415 = vpop.f32.mrb[0].mxu0
  %1416 = vmatprep.mubr.f32.mxu0 0.0
  %v1417 = vand.u32 %v173, 4294901760
  %v1418 = vsub.f32 %v173, %v1417
  %v1419 = vand.u32 %v1418, 4294901760
  %1420 = vmatmul.mubr.f32.gmra.mrb[0].mxu0 %v1419
  %v1421 = vpop.f32.mrb[0].mxu0
  %v1422 = vadd.f32 %v1108, %v1421
  %v1423 = vpop.f32.mrb[0].mxu0
  %1424 = vmatprep.mubr.f32.mxu0 0.0
  %v1425 = vand.u32 %v174, 4294901760
  %v1426 = vsub.f32 %v174, %v1425
  %v1427 = vand.u32 %v1426, 4294901760
  %1428 = vmatmul.mubr.f32.gmra.mrb[0].mxu0 %v1427
  %v1429 = vpop.f32.mrb[0].mxu0
  %v1430 = vadd.f32 %v1115, %v1429
  %v1431 = vpop.f32.mrb[0].mxu0
  %1432 = vmatprep.mubr.f32.mxu0 0.0
  %v1433 = vand.u32 %v175, 4294901760
  %v1434 = vsub.f32 %v175, %v1433
  %v1435 = vand.u32 %v1434, 4294901760
  %1436 = vmatmul.mubr.f32.gmra.mrb[0].mxu0 %v1435
  %v1437 = vpop.f32.mrb[0].mxu0
  %v1438 = vadd.f32 %v1122, %v1437
  %v1439 = vpop.f32.mrb[0].mxu0
  %1440 = vmatprep.mubr.f32.mxu0 0.0
  %v1441 = vand.u32 %v176, 4294901760
  %v1442 = vsub.f32 %v176, %v1441
  %v1443 = vand.u32 %v1442, 4294901760
  %1444 = vmatmul.mubr.f32.gmra.mrb[0].mxu0 %v1443
  %v1445 = vpop.f32.mrb[0].mxu0
  %v1446 = vadd.f32 %v1129, %v1445
  %v1447 = vpop.f32.mrb[0].mxu0
  %1448 = vmatprep.mubr.f32.mxu0 0.0
  %v1449 = vand.u32 %v177, 4294901760
  %v1450 = vsub.f32 %v177, %v1449
  %v1451 = vand.u32 %v1450, 4294901760
  %1452 = vmatmul.mubr.f32.gmra.mrb[0].mxu0 %v1451
  %v1453 = vpop.f32.mrb[0].mxu0
  %v1454 = vadd.f32 %v1136, %v1453
  %v1455 = vpop.f32.mrb[0].mxu0
  %1456 = vmatprep.mubr.f32.mxu0 0.0
  %v1457 = vand.u32 %v178, 4294901760
  %v1458 = vsub.f32 %v178, %v1457
  %v1459 = vand.u32 %v1458, 4294901760
  %1460 = vmatmul.mubr.f32.gmra.mrb[0].mxu0 %v1459
  %v1461 = vpop.f32.mrb[0].mxu0
  %v1462 = vadd.f32 %v1143, %v1461
  %v1463 = vpop.f32.mrb[0].mxu0
  %1464 = vmatprep.mubr.f32.mxu0 0.0
  %v1465 = vand.u32 %v179, 4294901760
  %v1466 = vsub.f32 %v179, %v1465
  %v1467 = vand.u32 %v1466, 4294901760
  %1468 = vmatmul.mubr.f32.gmra.mrb[0].mxu0 %v1467
  %v1469 = vpop.f32.mrb[0].mxu0
  %v1470 = vadd.f32 %v1150, %v1469
  %v1471 = vpop.f32.mrb[0].mxu0
  %1472 = vmatprep.mubr.f32.mxu0 0.0
  %v1473 = vand.u32 %v180, 4294901760
  %v1474 = vsub.f32 %v180, %v1473
  %v1475 = vand.u32 %v1474, 4294901760
  %1476 = vmatmul.mubr.f32.gmra.mrb[0].mxu0 %v1475
  %v1477 = vpop.f32.mrb[0].mxu0
  %v1478 = vadd.f32 %v1157, %v1477
  %v1479 = vpop.f32.mrb[0].mxu0
  %1480 = vmatprep.mubr.f32.mxu0 0.0
  %v1481 = vand.u32 %v197, 4294901760
  %v1482 = vsub.f32 %v197, %v1481
  %v1483 = vand.u32 %v1482, 4294901760
  %1484 = vmatmul.mubr.f32.gmra.mrb[0].mxu0 %v1483
  %v1485 = vpop.f32.mrb[0].mxu0
  %v1486 = vadd.f32 %v1164, %v1485
  %v1487 = vpop.f32.mrb[0].mxu0
  %1488 = vmatprep.mubr.f32.mxu0 0.0
  %v1489 = vand.u32 %v198, 4294901760
  %v1490 = vsub.f32 %v198, %v1489
  %v1491 = vand.u32 %v1490, 4294901760
  %1492 = vmatmul.mubr.f32.gmra.mrb[0].mxu0 %v1491
  %v1493 = vpop.f32.mrb[0].mxu0
  %v1494 = vadd.f32 %v1171, %v1493
  %v1495 = vpop.f32.mrb[0].mxu0
  %1496 = vmatprep.mubr.f32.mxu0 0.0
  %v1497 = vand.u32 %v199, 4294901760
  %v1498 = vsub.f32 %v199, %v1497
  %v1499 = vand.u32 %v1498, 4294901760
  %1500 = vmatmul.mubr.f32.gmra.mrb[0].mxu0 %v1499
  %v1501 = vpop.f32.mrb[0].mxu0
  %v1502 = vadd.f32 %v1178, %v1501
  %v1503 = vpop.f32.mrb[0].mxu0
  %1504 = vmatprep.mubr.f32.mxu0 0.0
  %v1505 = vand.u32 %v200, 4294901760
  %v1506 = vsub.f32 %v200, %v1505
  %v1507 = vand.u32 %v1506, 4294901760
  %1508 = vmatmul.mubr.f32.gmra.mrb[0].mxu0 %v1507
  %v1509 = vpop.f32.mrb[0].mxu0
  %v1510 = vadd.f32 %v1185, %v1509
  %v1511 = vpop.f32.mrb[0].mxu0
  %1512 = vmatprep.mubr.f32.mxu0 0.0
  %v1513 = vand.u32 %v201, 4294901760
  %v1514 = vsub.f32 %v201, %v1513
  %v1515 = vand.u32 %v1514, 4294901760
  %1516 = vmatmul.mubr.f32.gmra.mrb[0].mxu0 %v1515
  %v1517 = vpop.f32.mrb[0].mxu0
  %v1518 = vadd.f32 %v1192, %v1517
  %v1519 = vpop.f32.mrb[0].mxu0
  %1520 = vmatprep.mubr.f32.mxu0 0.0
  %v1521 = vand.u32 %v202, 4294901760
  %v1522 = vsub.f32 %v202, %v1521
  %v1523 = vand.u32 %v1522, 4294901760
  %1524 = vmatmul.mubr.f32.gmra.mrb[0].mxu0 %v1523
  %v1525 = vpop.f32.mrb[0].mxu0
  %v1526 = vadd.f32 %v1199, %v1525
  %v1527 = vpop.f32.mrb[0].mxu0
  %1528 = vmatprep.mubr.f32.mxu0 0.0
  %v1529 = vand.u32 %v203, 4294901760
  %v1530 = vsub.f32 %v203, %v1529
  %v1531 = vand.u32 %v1530, 4294901760
  %1532 = vmatmul.mubr.f32.gmra.mrb[0].mxu0 %v1531
  %v1533 = vpop.f32.mrb[0].mxu0
  %v1534 = vadd.f32 %v1206, %v1533
  %v1535 = vpop.f32.mrb[0].mxu0
  %1536 = vmatprep.mubr.f32.mxu0 0.0
  %v1537 = vand.u32 %v204, 4294901760
  %v1538 = vsub.f32 %v204, %v1537
  %v1539 = vand.u32 %v1538, 4294901760
  %1540 = vmatmul.mubr.f32.gmra.mrb[0].mxu0 %v1539
  %v1541 = vpop.f32.mrb[0].mxu0
  %v1542 = vadd.f32 %v1213, %v1541
  %v1543 = vpop.f32.mrb[0].mxu0
  %1544 = vmatprep.mubr.f32.mxu0 0.0
  %v1545 = vand.u32 %v205, 4294901760
  %v1546 = vsub.f32 %v205, %v1545
  %v1547 = vand.u32 %v1546, 4294901760
  %1548 = vmatmul.mubr.f32.gmra.mrb[0].mxu0 %v1547
  %v1549 = vpop.f32.mrb[0].mxu0
  %v1550 = vadd.f32 %v1220, %v1549
  %v1551 = vpop.f32.mrb[0].mxu0
  %1552 = vmatprep.mubr.f32.mxu0 0.0
  %v1553 = vand.u32 %v206, 4294901760
  %v1554 = vsub.f32 %v206, %v1553
  %v1555 = vand.u32 %v1554, 4294901760
  %1556 = vmatmul.mubr.f32.gmra.mrb[0].mxu0 %v1555
  %v1557 = vpop.f32.mrb[0].mxu0
  %v1558 = vadd.f32 %v1227, %v1557
  %v1559 = vpop.f32.mrb[0].mxu0
  %1560 = vmatprep.mubr.f32.mxu0 0.0
  %v1561 = vand.u32 %v207, 4294901760
  %v1562 = vsub.f32 %v207, %v1561
  %v1563 = vand.u32 %v1562, 4294901760
  %1564 = vmatmul.mubr.f32.gmra.mrb[0].mxu0 %v1563
  %v1565 = vpop.f32.mrb[0].mxu0
  %v1566 = vadd.f32 %v1234, %v1565
  %v1567 = vpop.f32.mrb[0].mxu0
  %1568 = vmatprep.mubr.f32.mxu0 0.0
  %v1569 = vand.u32 %v208, 4294901760
  %v1570 = vsub.f32 %v208, %v1569
  %v1571 = vand.u32 %v1570, 4294901760
  %1572 = vmatmul.mubr.f32.gmra.mrb[0].mxu0 %v1571
  %v1573 = vpop.f32.mrb[0].mxu0
  %v1574 = vadd.f32 %v1241, %v1573
  %v1575 = vpop.f32.mrb[0].mxu0
  %1576 = vmatprep.mubr.f32.mxu0 0.0
  %v1577 = vand.u32 %v209, 4294901760
  %v1578 = vsub.f32 %v209, %v1577
  %v1579 = vand.u32 %v1578, 4294901760
  %1580 = vmatmul.mubr.f32.gmra.mrb[0].mxu0 %v1579
  %v1581 = vpop.f32.mrb[0].mxu0
  %v1582 = vadd.f32 %v1248, %v1581
  %v1583 = vpop.f32.mrb[0].mxu0
  %1584 = vmatprep.mubr.f32.mxu0 0.0
  %v1585 = vand.u32 %v210, 4294901760
  %v1586 = vsub.f32 %v210, %v1585
  %v1587 = vand.u32 %v1586, 4294901760
  %1588 = vmatmul.mubr.f32.gmra.mrb[0].mxu0 %v1587
  %v1589 = vpop.f32.mrb[0].mxu0
  %v1590 = vadd.f32 %v1255, %v1589
  %v1591 = vpop.f32.mrb[0].mxu0
  %1592 = vmatprep.mubr.f32.mxu0 0.0
  %v1593 = vand.u32 %v211, 4294901760
  %v1594 = vsub.f32 %v211, %v1593
  %v1595 = vand.u32 %v1594, 4294901760
  %1596 = vmatmul.mubr.f32.gmra.mrb[0].mxu0 %v1595
  %v1597 = vpop.f32.mrb[0].mxu0
  %v1598 = vadd.f32 %v1262, %v1597
  %v1599 = vpop.f32.mrb[0].mxu0
  %1600 = vmatprep.mubr.f32.mxu0 0.0
  %v1601 = vand.u32 %v212, 4294901760
  %v1602 = vsub.f32 %v212, %v1601
  %v1603 = vand.u32 %v1602, 4294901760
  %1604 = vmatmul.mubr.f32.gmra.mrb[0].mxu0 %v1603
  %v1605 = vpop.f32.mrb[0].mxu0
  %v1606 = vadd.f32 %v1269, %v1605
  %v1607 = vpop.f32.mrb[0].mxu0
  %1608 = vdwg.mxu0
  %1609 = vmatprep.subr.mxu0 0.0
  %v1610 = vand.u32 %v133, 4294901760
  %v1611 = vsub.f32 %v133, %v1610
  %v1612 = vand.u32 %v1611, 4294901760
  %1613 = vmatpush1.msra.mxu0 %v1612
  %1614 = vmatprep.subr.mxu0 0.0
  %v1615 = vand.u32 %v134, 4294901760
  %v1616 = vsub.f32 %v134, %v1615
  %v1617 = vand.u32 %v1616, 4294901760
  %1618 = vmatpush1.msra.mxu0 %v1617
  %1619 = vmatprep.subr.mxu0 0.0
  %v1620 = vand.u32 %v135, 4294901760
  %v1621 = vsub.f32 %v135, %v1620
  %v1622 = vand.u32 %v1621, 4294901760
  %1623 = vmatpush1.msra.mxu0 %v1622
  %1624 = vmatprep.subr.mxu0 0.0
  %v1625 = vand.u32 %v136, 4294901760
  %v1626 = vsub.f32 %v136, %v1625
  %v1627 = vand.u32 %v1626, 4294901760
  %1628 = vmatpush1.msra.mxu0 %v1627
  %1629 = vmatprep.subr.mxu0 0.0
  %v1630 = vand.u32 %v137, 4294901760
  %v1631 = vsub.f32 %v137, %v1630
  %v1632 = vand.u32 %v1631, 4294901760
  %1633 = vmatpush1.msra.mxu0 %v1632
  %1634 = vmatprep.subr.mxu0 0.0
  %v1635 = vand.u32 %v138, 4294901760
  %v1636 = vsub.f32 %v138, %v1635
  %v1637 = vand.u32 %v1636, 4294901760
  %1638 = vmatpush1.msra.mxu0 %v1637
  %1639 = vmatprep.subr.mxu0 0.0
  %v1640 = vand.u32 %v139, 4294901760
  %v1641 = vsub.f32 %v139, %v1640
  %v1642 = vand.u32 %v1641, 4294901760
  %1643 = vmatpush1.msra.mxu0 %v1642
  %1644 = vmatprep.subr.mxu0 0.0
  %v1645 = vand.u32 %v140, 4294901760
  %v1646 = vsub.f32 %v140, %v1645
  %v1647 = vand.u32 %v1646, 4294901760
  %1648 = vmatpush1.msra.mxu0 %v1647
  %1649 = vmatprep.subr.mxu0 0.0
  %v1650 = vand.u32 %v141, 4294901760
  %v1651 = vsub.f32 %v141, %v1650
  %v1652 = vand.u32 %v1651, 4294901760
  %1653 = vmatpush1.msra.mxu0 %v1652
  %1654 = vmatprep.subr.mxu0 0.0
  %v1655 = vand.u32 %v142, 4294901760
  %v1656 = vsub.f32 %v142, %v1655
  %v1657 = vand.u32 %v1656, 4294901760
  %1658 = vmatpush1.msra.mxu0 %v1657
  %1659 = vmatprep.subr.mxu0 0.0
  %v1660 = vand.u32 %v143, 4294901760
  %v1661 = vsub.f32 %v143, %v1660
  %v1662 = vand.u32 %v1661, 4294901760
  %1663 = vmatpush1.msra.mxu0 %v1662
  %1664 = vmatprep.subr.mxu0 0.0
  %v1665 = vand.u32 %v144, 4294901760
  %v1666 = vsub.f32 %v144, %v1665
  %v1667 = vand.u32 %v1666, 4294901760
  %1668 = vmatpush1.msra.mxu0 %v1667
  %1669 = vmatprep.subr.mxu0 0.0
  %v1670 = vand.u32 %v145, 4294901760
  %v1671 = vsub.f32 %v145, %v1670
  %v1672 = vand.u32 %v1671, 4294901760
  %1673 = vmatpush1.msra.mxu0 %v1672
  %1674 = vmatprep.subr.mxu0 0.0
  %v1675 = vand.u32 %v146, 4294901760
  %v1676 = vsub.f32 %v146, %v1675
  %v1677 = vand.u32 %v1676, 4294901760
  %1678 = vmatpush1.msra.mxu0 %v1677
  %1679 = vmatprep.subr.mxu0 0.0
  %v1680 = vand.u32 %v147, 4294901760
  %v1681 = vsub.f32 %v147, %v1680
  %v1682 = vand.u32 %v1681, 4294901760
  %1683 = vmatpush1.msra.mxu0 %v1682
  %1684 = vmatprep.subr.mxu0 0.0
  %v1685 = vand.u32 %v148, 4294901760
  %v1686 = vsub.f32 %v148, %v1685
  %v1687 = vand.u32 %v1686, 4294901760
  %1688 = vmatpush1.msra.mxu0 %v1687
  %1689 = vmatprep.subr.mxu0 0.0
  %1690 = vmatpush1.msra.mxu0 0.0
  %1691 = vmatprep.subr.mxu0 0.0
  %1692 = vmatpush1.msra.mxu0 0.0
  %1693 = vmatprep.subr.mxu0 0.0
  %1694 = vmatpush1.msra.mxu0 0.0
  %1695 = vmatprep.subr.mxu0 0.0
  %1696 = vmatpush1.msra.mxu0 0.0
  %1697 = vmatprep.subr.mxu0 0.0
  %1698 = vmatpush1.msra.mxu0 0.0
  %1699 = vmatprep.subr.mxu0 0.0
  %1700 = vmatpush1.msra.mxu0 0.0
  %1701 = vmatprep.subr.mxu0 0.0
  %1702 = vmatpush1.msra.mxu0 0.0
  %1703 = vmatprep.subr.mxu0 0.0
  %1704 = vmatpush1.msra.mxu0 0.0
  %1705 = vmatprep.subr.mxu0 0.0
  %1706 = vmatpush1.msra.mxu0 0.0
  %1707 = vmatprep.subr.mxu0 0.0
  %1708 = vmatpush1.msra.mxu0 0.0
  %1709 = vmatprep.subr.mxu0 0.0
  %1710 = vmatpush1.msra.mxu0 0.0
  %1711 = vmatprep.subr.mxu0 0.0
  %1712 = vmatpush1.msra.mxu0 0.0
  %1713 = vmatprep.subr.mxu0 0.0
  %1714 = vmatpush1.msra.mxu0 0.0
  %1715 = vmatprep.subr.mxu0 0.0
  %1716 = vmatpush1.msra.mxu0 0.0
  %1717 = vmatprep.subr.mxu0 0.0
  %1718 = vmatpush1.msra.mxu0 0.0
  %1719 = vmatprep.subr.mxu0 0.0
  %1720 = vmatpush1.msra.mxu0 0.0
  %1721 = vmatprep.mubr.f32.mxu0 0.0
  %v1722 = vand.u32 %v165, 4294901760
  %1723 = vmatmul.mubr.f32.gmra.mrb[0].mxu0 %v1722
  %v1724 = vpop.f32.mrb[0].mxu0
  %v1725 = vadd.f32 %v1358, %v1724
  %v1726 = vpop.f32.mrb[0].mxu0
  %1727 = vmatprep.mubr.f32.mxu0 0.0
  %v1728 = vand.u32 %v166, 4294901760
  %1729 = vmatmul.mubr.f32.gmra.mrb[0].mxu0 %v1728
  %v1730 = vpop.f32.mrb[0].mxu0
  %v1731 = vadd.f32 %v1366, %v1730
  %v1732 = vpop.f32.mrb[0].mxu0
  %1733 = vmatprep.mubr.f32.mxu0 0.0
  %v1734 = vand.u32 %v167, 4294901760
  %1735 = vmatmul.mubr.f32.gmra.mrb[0].mxu0 %v1734
  %v1736 = vpop.f32.mrb[0].mxu0
  %v1737 = vadd.f32 %v1374, %v1736
  %v1738 = vpop.f32.mrb[0].mxu0
  %1739 = vmatprep.mubr.f32.mxu0 0.0
  %v1740 = vand.u32 %v168, 4294901760
  %1741 = vmatmul.mubr.f32.gmra.mrb[0].mxu0 %v1740
  %v1742 = vpop.f32.mrb[0].mxu0
  %v1743 = vadd.f32 %v1382, %v1742
  %v1744 = vpop.f32.mrb[0].mxu0
  %1745 = vmatprep.mubr.f32.mxu0 0.0
  %v1746 = vand.u32 %v169, 4294901760
  %1747 = vmatmul.mubr.f32.gmra.mrb[0].mxu0 %v1746
  %v1748 = vpop.f32.mrb[0].mxu0
  %v1749 = vadd.f32 %v1390, %v1748
  %v1750 = vpop.f32.mrb[0].mxu0
  %1751 = vmatprep.mubr.f32.mxu0 0.0
  %v1752 = vand.u32 %v170, 4294901760
  %1753 = vmatmul.mubr.f32.gmra.mrb[0].mxu0 %v1752
  %v1754 = vpop.f32.mrb[0].mxu0
  %v1755 = vadd.f32 %v1398, %v1754
  %v1756 = vpop.f32.mrb[0].mxu0
  %1757 = vmatprep.mubr.f32.mxu0 0.0
  %v1758 = vand.u32 %v171, 4294901760
  %1759 = vmatmul.mubr.f32.gmra.mrb[0].mxu0 %v1758
  %v1760 = vpop.f32.mrb[0].mxu0
  %v1761 = vadd.f32 %v1406, %v1760
  %v1762 = vpop.f32.mrb[0].mxu0
  %1763 = vmatprep.mubr.f32.mxu0 0.0
  %v1764 = vand.u32 %v172, 4294901760
  %1765 = vmatmul.mubr.f32.gmra.mrb[0].mxu0 %v1764
  %v1766 = vpop.f32.mrb[0].mxu0
  %v1767 = vadd.f32 %v1414, %v1766
  %v1768 = vpop.f32.mrb[0].mxu0
  %1769 = vmatprep.mubr.f32.mxu0 0.0
  %v1770 = vand.u32 %v173, 4294901760
  %1771 = vmatmul.mubr.f32.gmra.mrb[0].mxu0 %v1770
  %v1772 = vpop.f32.mrb[0].mxu0
  %v1773 = vadd.f32 %v1422, %v1772
  %v1774 = vpop.f32.mrb[0].mxu0
  %1775 = vmatprep.mubr.f32.mxu0 0.0
  %v1776 = vand.u32 %v174, 4294901760
  %1777 = vmatmul.mubr.f32.gmra.mrb[0].mxu0 %v1776
  %v1778 = vpop.f32.mrb[0].mxu0
  %v1779 = vadd.f32 %v1430, %v1778
  %v1780 = vpop.f32.mrb[0].mxu0
  %1781 = vmatprep.mubr.f32.mxu0 0.0
  %v1782 = vand.u32 %v175, 4294901760
  %1783 = vmatmul.mubr.f32.gmra.mrb[0].mxu0 %v1782
  %v1784 = vpop.f32.mrb[0].mxu0
  %v1785 = vadd.f32 %v1438, %v1784
  %v1786 = vpop.f32.mrb[0].mxu0
  %1787 = vmatprep.mubr.f32.mxu0 0.0
  %v1788 = vand.u32 %v176, 4294901760
  %1789 = vmatmul.mubr.f32.gmra.mrb[0].mxu0 %v1788
  %v1790 = vpop.f32.mrb[0].mxu0
  %v1791 = vadd.f32 %v1446, %v1790
  %v1792 = vpop.f32.mrb[0].mxu0
  %1793 = vmatprep.mubr.f32.mxu0 0.0
  %v1794 = vand.u32 %v177, 4294901760
  %1795 = vmatmul.mubr.f32.gmra.mrb[0].mxu0 %v1794
  %v1796 = vpop.f32.mrb[0].mxu0
  %v1797 = vadd.f32 %v1454, %v1796
  %v1798 = vpop.f32.mrb[0].mxu0
  %1799 = vmatprep.mubr.f32.mxu0 0.0
  %v1800 = vand.u32 %v178, 4294901760
  %1801 = vmatmul.mubr.f32.gmra.mrb[0].mxu0 %v1800
  %v1802 = vpop.f32.mrb[0].mxu0
  %v1803 = vadd.f32 %v1462, %v1802
  %v1804 = vpop.f32.mrb[0].mxu0
  %1805 = vmatprep.mubr.f32.mxu0 0.0
  %v1806 = vand.u32 %v179, 4294901760
  %1807 = vmatmul.mubr.f32.gmra.mrb[0].mxu0 %v1806
  %v1808 = vpop.f32.mrb[0].mxu0
  %v1809 = vadd.f32 %v1470, %v1808
  %v1810 = vpop.f32.mrb[0].mxu0
  %1811 = vmatprep.mubr.f32.mxu0 0.0
  %v1812 = vand.u32 %v180, 4294901760
  %1813 = vmatmul.mubr.f32.gmra.mrb[0].mxu0 %v1812
  %v1814 = vpop.f32.mrb[0].mxu0
  %v1815 = vadd.f32 %v1478, %v1814
  %v1816 = vpop.f32.mrb[0].mxu0
  %1817 = vmatprep.mubr.f32.mxu0 0.0
  %v1818 = vand.u32 %v197, 4294901760
  %1819 = vmatmul.mubr.f32.gmra.mrb[0].mxu0 %v1818
  %v1820 = vpop.f32.mrb[0].mxu0
  %v1821 = vadd.f32 %v1486, %v1820
  %v1822 = vpop.f32.mrb[0].mxu0
  %1823 = vmatprep.mubr.f32.mxu0 0.0
  %v1824 = vand.u32 %v198, 4294901760
  %1825 = vmatmul.mubr.f32.gmra.mrb[0].mxu0 %v1824
  %v1826 = vpop.f32.mrb[0].mxu0
  %v1827 = vadd.f32 %v1494, %v1826
  %v1828 = vpop.f32.mrb[0].mxu0
  %1829 = vmatprep.mubr.f32.mxu0 0.0
  %v1830 = vand.u32 %v199, 4294901760
  %1831 = vmatmul.mubr.f32.gmra.mrb[0].mxu0 %v1830
  %v1832 = vpop.f32.mrb[0].mxu0
  %v1833 = vadd.f32 %v1502, %v1832
  %v1834 = vpop.f32.mrb[0].mxu0
  %1835 = vmatprep.mubr.f32.mxu0 0.0
  %v1836 = vand.u32 %v200, 4294901760
  %1837 = vmatmul.mubr.f32.gmra.mrb[0].mxu0 %v1836
  %v1838 = vpop.f32.mrb[0].mxu0
  %v1839 = vadd.f32 %v1510, %v1838
  %v1840 = vpop.f32.mrb[0].mxu0
  %1841 = vmatprep.mubr.f32.mxu0 0.0
  %v1842 = vand.u32 %v201, 4294901760
  %1843 = vmatmul.mubr.f32.gmra.mrb[0].mxu0 %v1842
  %v1844 = vpop.f32.mrb[0].mxu0
  %v1845 = vadd.f32 %v1518, %v1844
  %v1846 = vpop.f32.mrb[0].mxu0
  %1847 = vmatprep.mubr.f32.mxu0 0.0
  %v1848 = vand.u32 %v202, 4294901760
  %1849 = vmatmul.mubr.f32.gmra.mrb[0].mxu0 %v1848
  %v1850 = vpop.f32.mrb[0].mxu0
  %v1851 = vadd.f32 %v1526, %v1850
  %v1852 = vpop.f32.mrb[0].mxu0
  %1853 = vmatprep.mubr.f32.mxu0 0.0
  %v1854 = vand.u32 %v203, 4294901760
  %1855 = vmatmul.mubr.f32.gmra.mrb[0].mxu0 %v1854
  %v1856 = vpop.f32.mrb[0].mxu0
  %v1857 = vadd.f32 %v1534, %v1856
  %v1858 = vpop.f32.mrb[0].mxu0
  %1859 = vmatprep.mubr.f32.mxu0 0.0
  %v1860 = vand.u32 %v204, 4294901760
  %1861 = vmatmul.mubr.f32.gmra.mrb[0].mxu0 %v1860
  %v1862 = vpop.f32.mrb[0].mxu0
  %v1863 = vadd.f32 %v1542, %v1862
  %v1864 = vpop.f32.mrb[0].mxu0
  %1865 = vmatprep.mubr.f32.mxu0 0.0
  %v1866 = vand.u32 %v205, 4294901760
  %1867 = vmatmul.mubr.f32.gmra.mrb[0].mxu0 %v1866
  %v1868 = vpop.f32.mrb[0].mxu0
  %v1869 = vadd.f32 %v1550, %v1868
  %v1870 = vpop.f32.mrb[0].mxu0
  %1871 = vmatprep.mubr.f32.mxu0 0.0
  %v1872 = vand.u32 %v206, 4294901760
  %1873 = vmatmul.mubr.f32.gmra.mrb[0].mxu0 %v1872
  %v1874 = vpop.f32.mrb[0].mxu0
  %v1875 = vadd.f32 %v1558, %v1874
  %v1876 = vpop.f32.mrb[0].mxu0
  %1877 = vmatprep.mubr.f32.mxu0 0.0
  %v1878 = vand.u32 %v207, 4294901760
  %1879 = vmatmul.mubr.f32.gmra.mrb[0].mxu0 %v1878
  %v1880 = vpop.f32.mrb[0].mxu0
  %v1881 = vadd.f32 %v1566, %v1880
  %v1882 = vpop.f32.mrb[0].mxu0
  %1883 = vmatprep.mubr.f32.mxu0 0.0
  %v1884 = vand.u32 %v208, 4294901760
  %1885 = vmatmul.mubr.f32.gmra.mrb[0].mxu0 %v1884
  %v1886 = vpop.f32.mrb[0].mxu0
  %v1887 = vadd.f32 %v1574, %v1886
  %v1888 = vpop.f32.mrb[0].mxu0
  %1889 = vmatprep.mubr.f32.mxu0 0.0
  %v1890 = vand.u32 %v209, 4294901760
  %1891 = vmatmul.mubr.f32.gmra.mrb[0].mxu0 %v1890
  %v1892 = vpop.f32.mrb[0].mxu0
  %v1893 = vadd.f32 %v1582, %v1892
  %v1894 = vpop.f32.mrb[0].mxu0
  %1895 = vmatprep.mubr.f32.mxu0 0.0
  %v1896 = vand.u32 %v210, 4294901760
  %1897 = vmatmul.mubr.f32.gmra.mrb[0].mxu0 %v1896
  %v1898 = vpop.f32.mrb[0].mxu0
  %v1899 = vadd.f32 %v1590, %v1898
  %v1900 = vpop.f32.mrb[0].mxu0
  %1901 = vmatprep.mubr.f32.mxu0 0.0
  %v1902 = vand.u32 %v211, 4294901760
  %1903 = vmatmul.mubr.f32.gmra.mrb[0].mxu0 %v1902
  %v1904 = vpop.f32.mrb[0].mxu0
  %v1905 = vadd.f32 %v1598, %v1904
  %v1906 = vpop.f32.mrb[0].mxu0
  %1907 = vmatprep.mubr.f32.mxu0 0.0
  %v1908 = vand.u32 %v212, 4294901760
  %1909 = vmatmul.mubr.f32.gmra.mrb[0].mxu0 %v1908
  %v1910 = vpop.f32.mrb[0].mxu0
  %v1911 = vadd.f32 %v1606, %v1910
  %v1912 = vpop.f32.mrb[0].mxu0
  %1913 = vdwg.mxu0
  %1914 = vmatprep.subr.mxu0 0.0
  %v1915 = vand.u32 %v133, 4294901760
  %1916 = vmatpush1.msra.mxu0 %v1915
  %1917 = vmatprep.subr.mxu0 0.0
  %v1918 = vand.u32 %v134, 4294901760
  %1919 = vmatpush1.msra.mxu0 %v1918
  %1920 = vmatprep.subr.mxu0 0.0
  %v1921 = vand.u32 %v135, 4294901760
  %1922 = vmatpush1.msra.mxu0 %v1921
  %1923 = vmatprep.subr.mxu0 0.0
  %v1924 = vand.u32 %v136, 4294901760
  %1925 = vmatpush1.msra.mxu0 %v1924
  %1926 = vmatprep.subr.mxu0 0.0
  %v1927 = vand.u32 %v137, 4294901760
  %1928 = vmatpush1.msra.mxu0 %v1927
  %1929 = vmatprep.subr.mxu0 0.0
  %v1930 = vand.u32 %v138, 4294901760
  %1931 = vmatpush1.msra.mxu0 %v1930
  %1932 = vmatprep.subr.mxu0 0.0
  %v1933 = vand.u32 %v139, 4294901760
  %1934 = vmatpush1.msra.mxu0 %v1933
  %1935 = vmatprep.subr.mxu0 0.0
  %v1936 = vand.u32 %v140, 4294901760
  %1937 = vmatpush1.msra.mxu0 %v1936
  %1938 = vmatprep.subr.mxu0 0.0
  %v1939 = vand.u32 %v141, 4294901760
  %1940 = vmatpush1.msra.mxu0 %v1939
  %1941 = vmatprep.subr.mxu0 0.0
  %v1942 = vand.u32 %v142, 4294901760
  %1943 = vmatpush1.msra.mxu0 %v1942
  %1944 = vmatprep.subr.mxu0 0.0
  %v1945 = vand.u32 %v143, 4294901760
  %1946 = vmatpush1.msra.mxu0 %v1945
  %1947 = vmatprep.subr.mxu0 0.0
  %v1948 = vand.u32 %v144, 4294901760
  %1949 = vmatpush1.msra.mxu0 %v1948
  %1950 = vmatprep.subr.mxu0 0.0
  %v1951 = vand.u32 %v145, 4294901760
  %1952 = vmatpush1.msra.mxu0 %v1951
  %1953 = vmatprep.subr.mxu0 0.0
  %v1954 = vand.u32 %v146, 4294901760
  %1955 = vmatpush1.msra.mxu0 %v1954
  %1956 = vmatprep.subr.mxu0 0.0
  %v1957 = vand.u32 %v147, 4294901760
  %1958 = vmatpush1.msra.mxu0 %v1957
  %1959 = vmatprep.subr.mxu0 0.0
  %v1960 = vand.u32 %v148, 4294901760
  %1961 = vmatpush1.msra.mxu0 %v1960
  %1962 = vmatprep.subr.mxu0 0.0
  %1963 = vmatpush1.msra.mxu0 0.0
  %1964 = vmatprep.subr.mxu0 0.0
  %1965 = vmatpush1.msra.mxu0 0.0
  %1966 = vmatprep.subr.mxu0 0.0
  %1967 = vmatpush1.msra.mxu0 0.0
  %1968 = vmatprep.subr.mxu0 0.0
  %1969 = vmatpush1.msra.mxu0 0.0
  %1970 = vmatprep.subr.mxu0 0.0
  %1971 = vmatpush1.msra.mxu0 0.0
  %1972 = vmatprep.subr.mxu0 0.0
  %1973 = vmatpush1.msra.mxu0 0.0
  %1974 = vmatprep.subr.mxu0 0.0
  %1975 = vmatpush1.msra.mxu0 0.0
  %1976 = vmatprep.subr.mxu0 0.0
  %1977 = vmatpush1.msra.mxu0 0.0
  %1978 = vmatprep.subr.mxu0 0.0
  %1979 = vmatpush1.msra.mxu0 0.0
  %1980 = vmatprep.subr.mxu0 0.0
  %1981 = vmatpush1.msra.mxu0 0.0
  %1982 = vmatprep.subr.mxu0 0.0
  %1983 = vmatpush1.msra.mxu0 0.0
  %1984 = vmatprep.subr.mxu0 0.0
  %1985 = vmatpush1.msra.mxu0 0.0
  %1986 = vmatprep.subr.mxu0 0.0
  %1987 = vmatpush1.msra.mxu0 0.0
  %1988 = vmatprep.subr.mxu0 0.0
  %1989 = vmatpush1.msra.mxu0 0.0
  %1990 = vmatprep.subr.mxu0 0.0
  %1991 = vmatpush1.msra.mxu0 0.0
  %1992 = vmatprep.subr.mxu0 0.0
  %1993 = vmatpush1.msra.mxu0 0.0
  %1994 = vmatprep.mubr.f32.mxu0 0.0
  %v1995 = vand.u32 %v165, 4294901760
  %1996 = vmatmul.mubr.f32.gmra.mrb[0].mxu0 %v1995
  %v1997 = vpop.f32.mrb[0].mxu0
  %v1998 = vadd.f32 %v1725, %v1997
  %v1999 = vpop.f32.mrb[0].mxu0
  %2000 = vmatprep.mubr.f32.mxu0 0.0
  %v2001 = vand.u32 %v166, 4294901760
  %2002 = vmatmul.mubr.f32.gmra.mrb[0].mxu0 %v2001
  %v2003 = vpop.f32.mrb[0].mxu0
  %v2004 = vadd.f32 %v1731, %v2003
  %v2005 = vpop.f32.mrb[0].mxu0
  %2006 = vmatprep.mubr.f32.mxu0 0.0
  %v2007 = vand.u32 %v167, 4294901760
  %2008 = vmatmul.mubr.f32.gmra.mrb[0].mxu0 %v2007
  %v2009 = vpop.f32.mrb[0].mxu0
  %v2010 = vadd.f32 %v1737, %v2009
  %v2011 = vpop.f32.mrb[0].mxu0
  %2012 = vmatprep.mubr.f32.mxu0 0.0
  %v2013 = vand.u32 %v168, 4294901760
  %2014 = vmatmul.mubr.f32.gmra.mrb[0].mxu0 %v2013
  %v2015 = vpop.f32.mrb[0].mxu0
  %v2016 = vadd.f32 %v1743, %v2015
  %v2017 = vpop.f32.mrb[0].mxu0
  %2018 = vmatprep.mubr.f32.mxu0 0.0
  %v2019 = vand.u32 %v169, 4294901760
  %2020 = vmatmul.mubr.f32.gmra.mrb[0].mxu0 %v2019
  %v2021 = vpop.f32.mrb[0].mxu0
  %v2022 = vadd.f32 %v1749, %v2021
  %v2023 = vpop.f32.mrb[0].mxu0
  %2024 = vmatprep.mubr.f32.mxu0 0.0
  %v2025 = vand.u32 %v170, 4294901760
  %2026 = vmatmul.mubr.f32.gmra.mrb[0].mxu0 %v2025
  %v2027 = vpop.f32.mrb[0].mxu0
  %v2028 = vadd.f32 %v1755, %v2027
  %v2029 = vpop.f32.mrb[0].mxu0
  %2030 = vmatprep.mubr.f32.mxu0 0.0
  %v2031 = vand.u32 %v171, 4294901760
  %2032 = vmatmul.mubr.f32.gmra.mrb[0].mxu0 %v2031
  %v2033 = vpop.f32.mrb[0].mxu0
  %v2034 = vadd.f32 %v1761, %v2033
  %v2035 = vpop.f32.mrb[0].mxu0
  %2036 = vmatprep.mubr.f32.mxu0 0.0
  %v2037 = vand.u32 %v172, 4294901760
  %2038 = vmatmul.mubr.f32.gmra.mrb[0].mxu0 %v2037
  %v2039 = vpop.f32.mrb[0].mxu0
  %v2040 = vadd.f32 %v1767, %v2039
  %v2041 = vpop.f32.mrb[0].mxu0
  %2042 = vmatprep.mubr.f32.mxu0 0.0
  %v2043 = vand.u32 %v173, 4294901760
  %2044 = vmatmul.mubr.f32.gmra.mrb[0].mxu0 %v2043
  %v2045 = vpop.f32.mrb[0].mxu0
  %v2046 = vadd.f32 %v1773, %v2045
  %v2047 = vpop.f32.mrb[0].mxu0
  %2048 = vmatprep.mubr.f32.mxu0 0.0
  %v2049 = vand.u32 %v174, 4294901760
  %2050 = vmatmul.mubr.f32.gmra.mrb[0].mxu0 %v2049
  %v2051 = vpop.f32.mrb[0].mxu0
  %v2052 = vadd.f32 %v1779, %v2051
  %v2053 = vpop.f32.mrb[0].mxu0
  %2054 = vmatprep.mubr.f32.mxu0 0.0
  %v2055 = vand.u32 %v175, 4294901760
  %2056 = vmatmul.mubr.f32.gmra.mrb[0].mxu0 %v2055
  %v2057 = vpop.f32.mrb[0].mxu0
  %v2058 = vadd.f32 %v1785, %v2057
  %v2059 = vpop.f32.mrb[0].mxu0
  %2060 = vmatprep.mubr.f32.mxu0 0.0
  %v2061 = vand.u32 %v176, 4294901760
  %2062 = vmatmul.mubr.f32.gmra.mrb[0].mxu0 %v2061
  %v2063 = vpop.f32.mrb[0].mxu0
  %v2064 = vadd.f32 %v1791, %v2063
  %v2065 = vpop.f32.mrb[0].mxu0
  %2066 = vmatprep.mubr.f32.mxu0 0.0
  %v2067 = vand.u32 %v177, 4294901760
  %2068 = vmatmul.mubr.f32.gmra.mrb[0].mxu0 %v2067
  %v2069 = vpop.f32.mrb[0].mxu0
  %v2070 = vadd.f32 %v1797, %v2069
  %v2071 = vpop.f32.mrb[0].mxu0
  %2072 = vmatprep.mubr.f32.mxu0 0.0
  %v2073 = vand.u32 %v178, 4294901760
  %2074 = vmatmul.mubr.f32.gmra.mrb[0].mxu0 %v2073
  %v2075 = vpop.f32.mrb[0].mxu0
  %v2076 = vadd.f32 %v1803, %v2075
  %v2077 = vpop.f32.mrb[0].mxu0
  %2078 = vmatprep.mubr.f32.mxu0 0.0
  %v2079 = vand.u32 %v179, 4294901760
  %2080 = vmatmul.mubr.f32.gmra.mrb[0].mxu0 %v2079
  %v2081 = vpop.f32.mrb[0].mxu0
  %v2082 = vadd.f32 %v1809, %v2081
  %v2083 = vpop.f32.mrb[0].mxu0
  %2084 = vmatprep.mubr.f32.mxu0 0.0
  %v2085 = vand.u32 %v180, 4294901760
  %2086 = vmatmul.mubr.f32.gmra.mrb[0].mxu0 %v2085
  %v2087 = vpop.f32.mrb[0].mxu0
  %v2088 = vadd.f32 %v1815, %v2087
  %v2089 = vpop.f32.mrb[0].mxu0
  %2090 = vmatprep.mubr.f32.mxu0 0.0
  %v2091 = vand.u32 %v197, 4294901760
  %2092 = vmatmul.mubr.f32.gmra.mrb[0].mxu0 %v2091
  %v2093 = vpop.f32.mrb[0].mxu0
  %v2094 = vadd.f32 %v1821, %v2093
  %v2095 = vpop.f32.mrb[0].mxu0
  %2096 = vmatprep.mubr.f32.mxu0 0.0
  %v2097 = vand.u32 %v198, 4294901760
  %2098 = vmatmul.mubr.f32.gmra.mrb[0].mxu0 %v2097
  %v2099 = vpop.f32.mrb[0].mxu0
  %v2100 = vadd.f32 %v1827, %v2099
  %v2101 = vpop.f32.mrb[0].mxu0
  %2102 = vmatprep.mubr.f32.mxu0 0.0
  %v2103 = vand.u32 %v199, 4294901760
  %2104 = vmatmul.mubr.f32.gmra.mrb[0].mxu0 %v2103
  %v2105 = vpop.f32.mrb[0].mxu0
  %v2106 = vadd.f32 %v1833, %v2105
  %v2107 = vpop.f32.mrb[0].mxu0
  %2108 = vmatprep.mubr.f32.mxu0 0.0
  %v2109 = vand.u32 %v200, 4294901760
  %2110 = vmatmul.mubr.f32.gmra.mrb[0].mxu0 %v2109
  %v2111 = vpop.f32.mrb[0].mxu0
  %v2112 = vadd.f32 %v1839, %v2111
  %v2113 = vpop.f32.mrb[0].mxu0
  %2114 = vmatprep.mubr.f32.mxu0 0.0
  %v2115 = vand.u32 %v201, 4294901760
  %2116 = vmatmul.mubr.f32.gmra.mrb[0].mxu0 %v2115
  %v2117 = vpop.f32.mrb[0].mxu0
  %v2118 = vadd.f32 %v1845, %v2117
  %v2119 = vpop.f32.mrb[0].mxu0
  %2120 = vmatprep.mubr.f32.mxu0 0.0
  %v2121 = vand.u32 %v202, 4294901760
  %2122 = vmatmul.mubr.f32.gmra.mrb[0].mxu0 %v2121
  %v2123 = vpop.f32.mrb[0].mxu0
  %v2124 = vadd.f32 %v1851, %v2123
  %v2125 = vpop.f32.mrb[0].mxu0
  %2126 = vmatprep.mubr.f32.mxu0 0.0
  %v2127 = vand.u32 %v203, 4294901760
  %2128 = vmatmul.mubr.f32.gmra.mrb[0].mxu0 %v2127
  %v2129 = vpop.f32.mrb[0].mxu0
  %v2130 = vadd.f32 %v1857, %v2129
  %v2131 = vpop.f32.mrb[0].mxu0
  %2132 = vmatprep.mubr.f32.mxu0 0.0
  %v2133 = vand.u32 %v204, 4294901760
  %2134 = vmatmul.mubr.f32.gmra.mrb[0].mxu0 %v2133
  %v2135 = vpop.f32.mrb[0].mxu0
  %v2136 = vadd.f32 %v1863, %v2135
  %v2137 = vpop.f32.mrb[0].mxu0
  %2138 = vmatprep.mubr.f32.mxu0 0.0
  %v2139 = vand.u32 %v205, 4294901760
  %2140 = vmatmul.mubr.f32.gmra.mrb[0].mxu0 %v2139
  %v2141 = vpop.f32.mrb[0].mxu0
  %v2142 = vadd.f32 %v1869, %v2141
  %v2143 = vpop.f32.mrb[0].mxu0
  %2144 = vmatprep.mubr.f32.mxu0 0.0
  %v2145 = vand.u32 %v206, 4294901760
  %2146 = vmatmul.mubr.f32.gmra.mrb[0].mxu0 %v2145
  %v2147 = vpop.f32.mrb[0].mxu0
  %v2148 = vadd.f32 %v1875, %v2147
  %v2149 = vpop.f32.mrb[0].mxu0
  %2150 = vmatprep.mubr.f32.mxu0 0.0
  %v2151 = vand.u32 %v207, 4294901760
  %2152 = vmatmul.mubr.f32.gmra.mrb[0].mxu0 %v2151
  %v2153 = vpop.f32.mrb[0].mxu0
  %v2154 = vadd.f32 %v1881, %v2153
  %v2155 = vpop.f32.mrb[0].mxu0
  %2156 = vmatprep.mubr.f32.mxu0 0.0
  %v2157 = vand.u32 %v208, 4294901760
  %2158 = vmatmul.mubr.f32.gmra.mrb[0].mxu0 %v2157
  %v2159 = vpop.f32.mrb[0].mxu0
  %v2160 = vadd.f32 %v1887, %v2159
  %v2161 = vpop.f32.mrb[0].mxu0
  %2162 = vmatprep.mubr.f32.mxu0 0.0
  %v2163 = vand.u32 %v209, 4294901760
  %2164 = vmatmul.mubr.f32.gmra.mrb[0].mxu0 %v2163
  %v2165 = vpop.f32.mrb[0].mxu0
  %v2166 = vadd.f32 %v1893, %v2165
  %v2167 = vpop.f32.mrb[0].mxu0
  %2168 = vmatprep.mubr.f32.mxu0 0.0
  %v2169 = vand.u32 %v210, 4294901760
  %2170 = vmatmul.mubr.f32.gmra.mrb[0].mxu0 %v2169
  %v2171 = vpop.f32.mrb[0].mxu0
  %v2172 = vadd.f32 %v1899, %v2171
  %v2173 = vpop.f32.mrb[0].mxu0
  %2174 = vmatprep.mubr.f32.mxu0 0.0
  %v2175 = vand.u32 %v211, 4294901760
  %2176 = vmatmul.mubr.f32.gmra.mrb[0].mxu0 %v2175
  %v2177 = vpop.f32.mrb[0].mxu0
  %v2178 = vadd.f32 %v1905, %v2177
  %v2179 = vpop.f32.mrb[0].mxu0
  %2180 = vmatprep.mubr.f32.mxu0 0.0
  %v2181 = vand.u32 %v212, 4294901760
  %2182 = vmatmul.mubr.f32.gmra.mrb[0].mxu0 %v2181
  %v2183 = vpop.f32.mrb[0].mxu0
  %v2184 = vadd.f32 %v1911, %v2183
  %v2185 = vpop.f32.mrb[0].mxu0
  %2186 = vdwg.mxu0
  %vm2187 = vcmask 261120
  %2188 = vst.msk [vmem:[%s2] sm:$0xff] %vm2187, %v1998
  %2189 = vst.msk [vmem:[%s2 + $0x8] sm:$0xff] %vm2187, %v2004
  %2190 = vst.msk [vmem:[%s2 + $0x10] sm:$0xff] %vm2187, %v2010
  %2191 = vst.msk [vmem:[%s2 + $0x18] sm:$0xff] %vm2187, %v2016
  %2192 = vst.msk [vmem:[%s2 + $0x20] sm:$0xff] %vm2187, %v2022
  %2193 = vst.msk [vmem:[%s2 + $0x28] sm:$0xff] %vm2187, %v2028
  %2194 = vst.msk [vmem:[%s2 + $0x30] sm:$0xff] %vm2187, %v2034
  %2195 = vst.msk [vmem:[%s2 + $0x38] sm:$0xff] %vm2187, %v2040
  %2196 = vst.msk [vmem:[%s2 + $0x40] sm:$0xff] %vm2187, %v2046
  %2197 = vst.msk [vmem:[%s2 + $0x48] sm:$0xff] %vm2187, %v2052
  %2198 = vst.msk [vmem:[%s2 + $0x50] sm:$0xff] %vm2187, %v2058
  %2199 = vst.msk [vmem:[%s2 + $0x58] sm:$0xff] %vm2187, %v2064
  %2200 = vst.msk [vmem:[%s2 + $0x60] sm:$0xff] %vm2187, %v2070
  %2201 = vst.msk [vmem:[%s2 + $0x68] sm:$0xff] %vm2187, %v2076
  %2202 = vst.msk [vmem:[%s2 + $0x70] sm:$0xff] %vm2187, %v2082
  %2203 = vst.msk [vmem:[%s2 + $0x78] sm:$0xff] %vm2187, %v2088
  %2204 = vst.msk [vmem:[%s2 + $0x80] sm:$0xff] %vm2187, %v2094
  %2205 = vst.msk [vmem:[%s2 + $0x88] sm:$0xff] %vm2187, %v2100
  %2206 = vst.msk [vmem:[%s2 + $0x90] sm:$0xff] %vm2187, %v2106
  %2207 = vst.msk [vmem:[%s2 + $0x98] sm:$0xff] %vm2187, %v2112
  %2208 = vst.msk [vmem:[%s2 + $0xa0] sm:$0xff] %vm2187, %v2118
  %2209 = vst.msk [vmem:[%s2 + $0xa8] sm:$0xff] %vm2187, %v2124
  %2210 = vst.msk [vmem:[%s2 + $0xb0] sm:$0xff] %vm2187, %v2130
  %2211 = vst.msk [vmem:[%s2 + $0xb8] sm:$0xff] %vm2187, %v2136
  %2212 = vst.msk [vmem:[%s2 + $0xc0] sm:$0xff] %vm2187, %v2142
  %2213 = vst.msk [vmem:[%s2 + $0xc8] sm:$0xff] %vm2187, %v2148
  %2214 = vst.msk [vmem:[%s2 + $0xd0] sm:$0xff] %vm2187, %v2154
  %2215 = vst.msk [vmem:[%s2 + $0xd8] sm:$0xff] %vm2187, %v2160
  %2216 = vst.msk [vmem:[%s2 + $0xe0] sm:$0xff] %vm2187, %v2166
  %2217 = vst.msk [vmem:[%s2 + $0xe8] sm:$0xff] %vm2187, %v2172
  %2218 = vst.msk [vmem:[%s2 + $0xf0] sm:$0xff] %vm2187, %v2178
  %2219 = vst.msk [vmem:[%s2 + $0xf8] sm:$0xff] %vm2187, %v2184
  // Predicated region
  $region10: #{tpu_custom_call.1} parent=0 // pred_check
    _
  $region11: #{tpu_custom_call.1} parent=0 // pred_check_branch
    %2221 = sbr.rel (0) target = $region13
  $region12: #{tpu_custom_call.1} parent=0 // pred_region
    _
  $region13: #{tpu_custom_call.1} parent=0 // pred_fallthru
    _
  // Predicated region
  $region14: #{tpu_custom_call.1} parent=0 // pred_check
    _
  $region15: #{tpu_custom_call.1} parent=0 // pred_check_branch
    %2223 = sbr.rel (0) target = $region17
  $region16: #{tpu_custom_call.1} parent=0 // pred_region
    _
  $region17: #{tpu_custom_call.1} parent=0 // pred_fallthru
    _

</llo_original>
